<compile_context>
chip_gen: v7x
topology: tpu7x:2x2x1
jax: 0.10.0
libtpu: 0.0.40
codegen_flags: <defaults>
</compile_context>

<pallas_src>
import functools

import jax
import jax.numpy as jnp
from jax import lax
from jax.experimental import pallas as pl
from jax.experimental.pallas import tpu as pltpu


def mlp_kernel(x_ref,                      # VMEM tile: [TB, D]  (f1 | f2 concatenated)
               w1_ref, b1_ref,             # layer 1: [D, H] (fw folded in), [1, H]
               w2_ref, b2_ref,             # layer 2: [H, H], [1, H]
               w3_ref, b3_ref,             # head (lane-padded): [H, Cp], [1, Cp]
               o_ref,                      # out tile: [TB, Cp]
               *, d1):                     # static: lane split point (= D1)
    eps = 1e-12  # matches F.normalize default eps

    # --- per-feature F.normalize(dim=-1) via lane-masked reductions, in f32 ---
    x = x_ref[...].astype(jnp.float32)
    lane = lax.broadcasted_iota(jnp.int32, x.shape, 1)
    is_f1 = lane < d1
    sq = x * x
    s1 = jnp.sum(jnp.where(is_f1, sq, 0.0), axis=-1, keepdims=True)
    s2 = jnp.sum(jnp.where(is_f1, 0.0, sq), axis=-1, keepdims=True)
    inv1 = lax.rsqrt(jnp.maximum(s1, eps * eps))   # x*rsqrt(max(|x|^2,eps^2)) == x/max(|x|,eps)
    inv2 = lax.rsqrt(jnp.maximum(s2, eps * eps))
    xn = (x * jnp.where(is_f1, inv1, inv2)).astype(w1_ref.dtype)

    # --- layer 1: single K=D matmul + bias + ReLU (fw already folded into W1) ---
    h = jnp.dot(xn, w1_ref[...], preferred_element_type=jnp.float32) + b1_ref[...]
    h = jnp.maximum(h, 0.0).astype(w2_ref.dtype)

    # --- layer 2: matmul + bias + ReLU ---
    h = jnp.dot(h, w2_ref[...], preferred_element_type=jnp.float32) + b2_ref[...]
    h = jnp.maximum(h, 0.0).astype(w3_ref.dtype)

    # --- head: matmul + bias (lane-dense, Cp = multiple of 128, unmasked vst) ---
    o_ref[...] = (jnp.dot(h, w3_ref[...], preferred_element_type=jnp.float32)
                  + b3_ref[...]).astype(o_ref.dtype)


def _round_up(x, m):
    return ((x + m - 1) // m) * m


def prepare_params(params, feature_weights, d1, compute_dtype=jnp.bfloat16):
    """One-time weight prep (hoisted out of the hot path).

    Folds the per-feature weights into W1's rows (exact in f32), casts weights
    to the compute dtype, and lane-pads the head to a multiple of 128.
    Returns (prepped_dict, num_classes).
    """
    D, H = params["w1"].shape
    C = params["w3"].shape[1]
    C_pad = _round_up(max(C, 128), 128)

    row_scale = jnp.concatenate(
        [jnp.full((d1, 1), feature_weights[0], jnp.float32),
         jnp.full((D - d1, 1), feature_weights[1], jnp.float32)], axis=0)
    w1 = (params["w1"].astype(jnp.float32) * row_scale).astype(compute_dtype)
    b1 = params["b1"].astype(jnp.float32)
    w2 = params["w2"].astype(compute_dtype)
    b2 = params["b2"].astype(jnp.float32)
    w3 = jnp.zeros((H, C_pad), compute_dtype).at[:, :C].set(
        params["w3"].astype(compute_dtype))
    b3 = jnp.zeros((1, C_pad), jnp.float32).at[:, :C].set(
        params["b3"].astype(jnp.float32))

    prepped = {"w1": w1, "b1": b1, "w2": w2, "b2": b2, "w3": w3, "b3": b3}
    return prepped, C


@functools.partial(jax.jit, static_argnames=("num_classes", "tile_b"))
def mlp_forward(prepped, f1, f2, *, num_classes, tile_b=256):
    """Hot path: concat/pad activations + one pallas_call. Weights come prepped."""
    B, D1 = f1.shape
    _, D2 = f2.shape
    D = D1 + D2
    H = prepped["w2"].shape[0]
    C_pad = prepped["w3"].shape[1]
    out_dtype = prepped["w3"].dtype

    # Single concatenated [B, D] input: one DMA stream per tile, lane-denser
    # tiles, and a single K=D layer-1 dot (fewer MXU LHS pushes than split-W1).
    x = jnp.concatenate([f1, f2], axis=1)

    # Batch tile: multiple of 8 sublanes; keep >= 2 tiles when possible so v7x
    # can shard the "parallel" batch axis across both TensorCores.
    tb = min(tile_b, _round_up(B, 8))
    B_pad = _round_up(B, tb)
    if B_pad != B:
        x = jnp.pad(x, ((0, B_pad - B), (0, 0)))
    n_tiles = B_pad // tb

    resident = lambda shape: pl.BlockSpec(shape, lambda i: (0, 0))  # stays in VMEM

    grid_spec = pltpu.PrefetchScalarGridSpec(
        num_scalar_prefetch=0,
        grid=(n_tiles,),
        in_specs=[
            pl.BlockSpec((tb, D), lambda i: (i, 0)),          # activation tile
            resident((D, H)), resident((1, H)),               # layer 1
            resident((H, H)), resident((1, H)),               # layer 2
            resident((H, C_pad)), resident((1, C_pad)),       # head (lane-padded)
        ],
        out_specs=pl.BlockSpec((tb, C_pad), lambda i: (i, 0)),
    )

    # TODO(synk): for H >~ 2048 the all-weights-resident strategy must be
    # re-checked against v7x's 64 MiB VMEM; switch layers 2/3 to a grid axis
    # ("arbitrary") with a VMEM accumulator instead of keeping them resident.
    out_padded = pl.pallas_call(
        functools.partial(mlp_kernel, d1=D1),
        out_shape=jax.ShapeDtypeStruct((B_pad, C_pad), out_dtype),
        grid_spec=grid_spec,
        compiler_params=pltpu.CompilerParams(
            dimension_semantics=("parallel",),      # v7x: shard batch over 2 TCs
            vmem_limit_bytes=32 * 1024 * 1024,      # plenty for these tiles
        ),
    )(x, prepped["w1"], prepped["b1"], prepped["w2"], prepped["b2"],
      prepped["w3"], prepped["b3"])

    return out_padded[:B, :num_classes]


def init_params(key, input_dim, hidden_dim, num_classes):
    ks = jax.random.split(key, 6)
    scale = 0.1
    return {
        "w1": scale * jax.random.normal(ks[0], (input_dim, hidden_dim), jnp.float32),
        "b1": scale * jax.random.normal(ks[1], (1, hidden_dim), jnp.float32),
        "w2": scale * jax.random.normal(ks[2], (hidden_dim, hidden_dim), jnp.float32),
        "b2": scale * jax.random.normal(ks[3], (1, hidden_dim), jnp.float32),
        "w3": scale * jax.random.normal(ks[4], (hidden_dim, num_classes), jnp.float32),
        "b3": scale * jax.random.normal(ks[5], (1, num_classes), jnp.float32),
    }


def reference_forward(feature_weights, f1, f2, params):
    """Pure-JAX reference mirroring the PyTorch module (num_layers=2)."""
    eps = 1e-12
    def norm(x):
        n = jnp.sqrt(jnp.sum(x * x, axis=-1, keepdims=True))
        return x / jnp.maximum(n, eps)
    x = jnp.concatenate([norm(f1) * feature_weights[0],
                         norm(f2) * feature_weights[1]], axis=1)
    h = jnp.maximum(x @ params["w1"] + params["b1"], 0.0)
    h = jnp.maximum(h @ params["w2"] + params["b2"], 0.0)
    return h @ params["w3"] + params["b3"]


if __name__ == "__main__":
    # 2 features of dim 16 each -> input_dim=32, hidden_dim=32, num_classes=8,
    # num_layers=2. Batch 512 with tile_b=256 -> 2 grid tiles (pipelines and
    # lets v7x use both TensorCores).
    B, D1, D2 = 512, 16, 16
    hidden_dim, num_classes = 32, 8

    key = jax.random.PRNGKey(0)
    kf1, kf2, kp = jax.random.split(key, 3)
    f1 = jax.random.normal(kf1, (B, D1), jnp.float32)
    f2 = jax.random.normal(kf2, (B, D2), jnp.float32)
    params = init_params(kp, D1 + D2, hidden_dim, num_classes)
    feature_weights = jnp.array([1.0, 0.5], jnp.float32)

    ref = reference_forward(feature_weights, f1, f2, params)

    # f32 compute/output path: tight check against the PyTorch-equivalent reference.
    prepped_f32, C = prepare_params(params, feature_weights, D1, jnp.float32)
    out_f32 = jax.block_until_ready(
        mlp_forward(prepped_f32, f1, f2, num_classes=C, tile_b=256))
    assert out_f32.shape == (B, num_classes)
    assert jnp.allclose(out_f32, ref, atol=1e-4, rtol=1e-4), "f32 mismatch vs reference"

    # bf16 compute + bf16 output (halved writeback), f32 accumulation: looser tol.
    prepped_bf16, _ = prepare_params(params, feature_weights, D1, jnp.bfloat16)
    out_bf16 = jax.block_until_ready(
        mlp_forward(prepped_bf16, f1, f2, num_classes=C, tile_b=256))
    assert out_bf16.shape == (B, num_classes)
    assert jnp.allclose(out_bf16.astype(jnp.float32), ref, atol=3e-2, rtol=3e-2), \
        "bf16 mismatch vs reference"

    print("KERNEL_OK")
</pallas_src>

<mosaic_0001>
module attributes {stable_mosaic.version = 11 : i64} {
  func.func @mlp_kernel(%arg0: i32, %arg1: memref<256x32xf32, #tpu.memory_space<vmem>>, %arg2: memref<32x32xf32, #tpu.memory_space<vmem>>, %arg3: memref<1x32xf32, #tpu.memory_space<vmem>>, %arg4: memref<32x32xf32, #tpu.memory_space<vmem>>, %arg5: memref<1x32xf32, #tpu.memory_space<vmem>>, %arg6: memref<32x128xf32, #tpu.memory_space<vmem>>, %arg7: memref<1x128xf32, #tpu.memory_space<vmem>>, %arg8: memref<256x128xf32, #tpu.memory_space<vmem>>) attributes {dimension_semantics = [#tpu.dimension_semantics<parallel>], iteration_bounds = array<i64: 2>, scalar_prefetch = 0 : i64, scratch_operands = 0 : i64, tpu.core_type = #tpu.core_type<tc>, window_params = [{transform_indices = @transform_0, window_bounds = array<i64: 256, 32>}, {pipeline_mode = #tpu.pipeline_mode<synchronous>, transform_indices = @transform_1, window_bounds = array<i64: 32, 32>}, {pipeline_mode = #tpu.pipeline_mode<synchronous>, transform_indices = @transform_2, window_bounds = array<i64: 1, 32>}, {pipeline_mode = #tpu.pipeline_mode<synchronous>, transform_indices = @transform_3, window_bounds = array<i64: 32, 32>}, {pipeline_mode = #tpu.pipeline_mode<synchronous>, transform_indices = @transform_4, window_bounds = array<i64: 1, 32>}, {pipeline_mode = #tpu.pipeline_mode<synchronous>, transform_indices = @transform_5, window_bounds = array<i64: 32, 128>}, {pipeline_mode = #tpu.pipeline_mode<synchronous>, transform_indices = @transform_6, window_bounds = array<i64: 1, 128>}, {transform_indices = @transform_7, window_bounds = array<i64: 256, 128>}]} {
    %c0 = arith.constant 0 : index
    %c0_0 = arith.constant 0 : index
    %0 = vector.load %arg1[%c0, %c0_0] : memref<256x32xf32, #tpu.memory_space<vmem>>, vector<256x32xf32>
    %1 = tpu.iota {dimensions = array<i32: 1>} : vector<256x32xi32>
    %c16_i32 = arith.constant 16 : i32
    %2 = vector.broadcast %c16_i32 : i32 to vector<256x32xi32>
    %3 = arith.cmpi slt, %1, %2 : vector<256x32xi32>
    %4 = arith.mulf %0, %0 : vector<256x32xf32>
    %cst = arith.constant 0.000000e+00 : f32
    %5 = vector.broadcast %cst : f32 to vector<256x32xf32>
    %6 = arith.select %3, %4, %5 : vector<256x32xi1>, vector<256x32xf32>
    %cst_1 = arith.constant dense<0.000000e+00> : vector<256xf32>
    %7 = vector.multi_reduction <add>, %6, %cst_1 [1] : vector<256x32xf32> to vector<256xf32>
    %8 = vector.shape_cast %7 : vector<256xf32> to vector<256x1xf32>
    %cst_2 = arith.constant 0.000000e+00 : f32
    %9 = vector.broadcast %cst_2 : f32 to vector<256x32xf32>
    %10 = arith.select %3, %9, %4 : vector<256x32xi1>, vector<256x32xf32>
    %cst_3 = arith.constant dense<0.000000e+00> : vector<256xf32>
    %11 = vector.multi_reduction <add>, %10, %cst_3 [1] : vector<256x32xf32> to vector<256xf32>
    %12 = vector.shape_cast %11 : vector<256xf32> to vector<256x1xf32>
    %cst_4 = arith.constant 1.000000e-24 : f32
    %13 = vector.broadcast %cst_4 : f32 to vector<256x1xf32>
    %14 = arith.maximumf %8, %13 : vector<256x1xf32>
    %15 = math.rsqrt %14 : vector<256x1xf32>
    %cst_5 = arith.constant 1.000000e-24 : f32
    %16 = vector.broadcast %cst_5 : f32 to vector<256x1xf32>
    %17 = arith.maximumf %12, %16 : vector<256x1xf32>
    %18 = math.rsqrt %17 : vector<256x1xf32>
    %19 = vector.shape_cast %15 : vector<256x1xf32> to vector<256x1xf32>
    %20 = vector.broadcast %19 : vector<256x1xf32> to vector<256x32xf32>
    %21 = vector.shape_cast %18 : vector<256x1xf32> to vector<256x1xf32>
    %22 = vector.broadcast %21 : vector<256x1xf32> to vector<256x32xf32>
    %23 = arith.select %3, %20, %22 : vector<256x32xi1>, vector<256x32xf32>
    %24 = arith.mulf %0, %23 : vector<256x32xf32>
    %c0_6 = arith.constant 0 : index
    %c0_7 = arith.constant 0 : index
    %25 = vector.load %arg2[%c0_6, %c0_7] : memref<32x32xf32, #tpu.memory_space<vmem>>, vector<32x32xf32>
    %cst_8 = arith.constant dense<0.000000e+00> : vector<256x32xf32>
    %26 = tpu.matmul %24, %25, %cst_8 {dimension_numbers = #tpu.dot_dimension_numbers<[1], [0], [0], [1], [0, 0, 1, 1], [], []>} : vector<256x32xf32>, vector<32x32xf32>, vector<256x32xf32> -> vector<256x32xf32>
    %c0_9 = arith.constant 0 : index
    %c0_10 = arith.constant 0 : index
    %27 = vector.load %arg3[%c0_9, %c0_10] : memref<1x32xf32, #tpu.memory_space<vmem>>, vector<1x32xf32>
    %28 = vector.broadcast %27 : vector<1x32xf32> to vector<256x32xf32>
    %29 = arith.addf %26, %28 : vector<256x32xf32>
    %cst_11 = arith.constant 0.000000e+00 : f32
    %30 = vector.broadcast %cst_11 : f32 to vector<256x32xf32>
    %31 = arith.maximumf %29, %30 : vector<256x32xf32>
    %c0_12 = arith.constant 0 : index
    %c0_13 = arith.constant 0 : index
    %32 = vector.load %arg4[%c0_12, %c0_13] : memref<32x32xf32, #tpu.memory_space<vmem>>, vector<32x32xf32>
    %cst_14 = arith.constant dense<0.000000e+00> : vector<256x32xf32>
    %33 = tpu.matmul %31, %32, %cst_14 {dimension_numbers = #tpu.dot_dimension_numbers<[1], [0], [0], [1], [0, 0, 1, 1], [], []>} : vector<256x32xf32>, vector<32x32xf32>, vector<256x32xf32> -> vector<256x32xf32>
    %c0_15 = arith.constant 0 : index
    %c0_16 = arith.constant 0 : index
    %34 = vector.load %arg5[%c0_15, %c0_16] : memref<1x32xf32, #tpu.memory_space<vmem>>, vector<1x32xf32>
    %35 = vector.broadcast %34 : vector<1x32xf32> to vector<256x32xf32>
    %36 = arith.addf %33, %35 : vector<256x32xf32>
    %cst_17 = arith.constant 0.000000e+00 : f32
    %37 = vector.broadcast %cst_17 : f32 to vector<256x32xf32>
    %38 = arith.maximumf %36, %37 : vector<256x32xf32>
    %c0_18 = arith.constant 0 : index
    %c0_19 = arith.constant 0 : index
    %39 = vector.load %arg6[%c0_18, %c0_19] : memref<32x128xf32, #tpu.memory_space<vmem>>, vector<32x128xf32>
    %cst_20 = arith.constant dense<0.000000e+00> : vector<256x128xf32>
    %40 = tpu.matmul %38, %39, %cst_20 {dimension_numbers = #tpu.dot_dimension_numbers<[1], [0], [0], [1], [0, 0, 1, 1], [], []>} : vector<256x32xf32>, vector<32x128xf32>, vector<256x128xf32> -> vector<256x128xf32>
    %c0_21 = arith.constant 0 : index
    %c0_22 = arith.constant 0 : index
    %41 = vector.load %arg7[%c0_21, %c0_22] : memref<1x128xf32, #tpu.memory_space<vmem>>, vector<1x128xf32>
    %42 = vector.broadcast %41 : vector<1x128xf32> to vector<256x128xf32>
    %43 = arith.addf %40, %42 : vector<256x128xf32>
    %c0_23 = arith.constant 0 : index
    %c0_24 = arith.constant 0 : index
    %44 = vector.load %arg8[%c0_23, %c0_24] : memref<256x128xf32, #tpu.memory_space<vmem>>, vector<256x128xf32>
    tpu.vector_store %arg8[%c0_23, %c0_24], %43 {strides = array<i32>} : memref<256x128xf32, #tpu.memory_space<vmem>>, vector<256x128xf32>,
    return
  }
  func.func @transform_0(%arg0: i32) -> (i32, i32) {
    %c0_i32 = arith.constant 0 : i32
    %c0_i32_0 = arith.constant 0 : i32
    return %arg0, %c0_i32 : i32, i32
  }
  func.func @transform_1(%arg0: i32) -> (i32, i32) {
    %c0_i32 = arith.constant 0 : i32
    %c0_i32_0 = arith.constant 0 : i32
    %c0_i32_1 = arith.constant 0 : i32
    return %c0_i32, %c0_i32_0 : i32, i32
  }
  func.func @transform_2(%arg0: i32) -> (i32, i32) {
    %c0_i32 = arith.constant 0 : i32
    %c0_i32_0 = arith.constant 0 : i32
    %c0_i32_1 = arith.constant 0 : i32
    return %c0_i32, %c0_i32_0 : i32, i32
  }
  func.func @transform_3(%arg0: i32) -> (i32, i32) {
    %c0_i32 = arith.constant 0 : i32
    %c0_i32_0 = arith.constant 0 : i32
    %c0_i32_1 = arith.constant 0 : i32
    return %c0_i32, %c0_i32_0 : i32, i32
  }
  func.func @transform_4(%arg0: i32) -> (i32, i32) {
    %c0_i32 = arith.constant 0 : i32
    %c0_i32_0 = arith.constant 0 : i32
    %c0_i32_1 = arith.constant 0 : i32
    return %c0_i32, %c0_i32_0 : i32, i32
  }
  func.func @transform_5(%arg0: i32) -> (i32, i32) {
    %c0_i32 = arith.constant 0 : i32
    %c0_i32_0 = arith.constant 0 : i32
    %c0_i32_1 = arith.constant 0 : i32
    return %c0_i32, %c0_i32_0 : i32, i32
  }
  func.func @transform_6(%arg0: i32) -> (i32, i32) {
    %c0_i32 = arith.constant 0 : i32
    %c0_i32_0 = arith.constant 0 : i32
    %c0_i32_1 = arith.constant 0 : i32
    return %c0_i32, %c0_i32_0 : i32, i32
  }
  func.func @transform_7(%arg0: i32) -> (i32, i32) {
    %c0_i32 = arith.constant 0 : i32
    %c0_i32_0 = arith.constant 0 : i32
    return %arg0, %c0_i32 : i32, i32
  }
}

</mosaic_0001>

<llo_original>
// kernel: mlp_forward.1
$region0: #{mlp_forward.1}
  #allocation0 [shape = 'u32[]', space=smem, size = 0x4, offset = 0x4, fixed_abs, tag = 'smem constant byte address 0x4 - core index']
  #allocation1 [shape = 'u32[144,128]{1,0:T(1,128)}', space=vmem, size = 0x12000, scoped, tag = 'internal scratch']
  %s0 = inlined_call_operand.vmem [shape: f32[512,32], index: 0, kind: input, shape index: {}]
  %s1 = inlined_call_operand.vmem [shape: f32[32,32], index: 1, kind: input, shape index: {}]
  %s2 = inlined_call_operand.vmem [shape: f32[1,32], index: 2, kind: input, shape index: {}]
  %s3 = inlined_call_operand.vmem [shape: f32[32,32], index: 3, kind: input, shape index: {}]
  %s4 = inlined_call_operand.vmem [shape: f32[1,32], index: 4, kind: input, shape index: {}]
  %s5 = inlined_call_operand.vmem [shape: f32[32,128], index: 5, kind: input, shape index: {}]
  %s6 = inlined_call_operand.vmem [shape: f32[1,128], index: 6, kind: input, shape index: {}]
  %s7 = inlined_call_operand.vmem [shape: f32[512,128], index: 7, kind: output, shape index: {}]
  %s8 = sld [smem:[#allocation0]]
  $region61: #{mlp_forward.1} parent=0
    _
  %s10 = ssub.s32 1, %s8
  %s11 = scalar_select 0, %s10, %s8
  loop: start=0, step=1, limit=4
  $region2: #{mlp_forward.1} parent=0 // loop_pre_header
    _
  $region3: #{mlp_forward.1} parent=0 // loop_header
    %s13 = sphi 0, %s17
    %p14 = scmp.ge.s32.totalorder %s13, 4
    %s23 = sphi 0, %s25
    %s26 = sphi 0, %s23
    %s27 = sphi 0, %s26
    %s43 = sphi 0, %s27
    %s47 = sphi 0, %s47
    %s49 = sphi 0, %s47
    %s50 = sphi 0, %s49
    %s64 = sphi 0, %s50
    %s68 = sphi 0, %s68
    %s70 = sphi 0, %s68
    %s71 = sphi 0, %s70
    %s85 = sphi 0, %s71
    %s89 = sphi 0, %s89
    %s91 = sphi 0, %s89
    %s92 = sphi 0, %s91
    %s106 = sphi 0, %s92
    %s110 = sphi 0, %s110
    %s112 = sphi 0, %s110
    %s113 = sphi 0, %s112
    %s127 = sphi 0, %s113
    %s131 = sphi 0, %s131
    %s133 = sphi 0, %s131
    %s134 = sphi 0, %s133
    %s148 = sphi 0, %s134
    %s152 = sphi 0, %s152
    %s154 = sphi 0, %s152
    %s155 = sphi 0, %s154
    %s169 = sphi 0, %s155
    %s175 = sphi 0, %s177
    %s178 = sphi 0, %s175
    %s179 = sphi 0, %s178
    %s195 = sphi 0, %s179
  $region4: #{mlp_forward.1} parent=0 // loop_header_branch
    %16 = sbr.rel (%p14) target = $region8
  $region5: #{mlp_forward.1} parent=0 // loop_body
    %s18 = ssub.s32 %s13, 1
    %s19 = ssub.s32 %s13, 2
    %s20 = sadd.s32 %s13, 1
    %s21 = ssub.s32 %s13, %s20
    %p22 = scmp.eq.s32.totalorder %s21, 0
    %s24 = sadd.s32 %s23, 1
    %s25 = scalar_select %p22, %s23, %s24
    %p28 = pneg %p22
    %p29 = scmp.eq.s32.totalorder %s13, 1
    %p30 = por %p28, %p29
    %p31 = scmp.ne.s32.totalorder %s23, %s26
    %p32 = scmp.eq.s32.totalorder %s13, 0
    %p33 = por %p31, %p32
    %p34 = scmp.ne.s32.totalorder %s23, %s26
    %p35 = scmp.eq.s32.totalorder %s18, 1
    %p36 = por %p34, %p35
    %p37 = scmp.ne.s32.totalorder %s26, %s27
    %p38 = scmp.eq.s32.totalorder %s18, 0
    %p39 = por %p37, %p38
    %p40 = scmp.ne.s32.totalorder %s26, %s27
    %p41 = scmp.eq.s32.totalorder %s19, 1
    %p42 = por %p40, %p41
    %p44 = scmp.ne.s32.totalorder %s27, %s43
    %p45 = scmp.eq.s32.totalorder %s19, 0
    %p46 = por %p44, %p45
    %s48 = sadd.s32 %s47, 1
    %p51 = scmp.eq.s32.totalorder %s13, 1
    %p52 = scmp.ne.s32.totalorder %s47, %s49
    %p53 = scmp.eq.s32.totalorder %s13, 0
    %p54 = por %p52, %p53
    %p55 = scmp.ne.s32.totalorder %s47, %s49
    %p56 = scmp.eq.s32.totalorder %s18, 1
    %p57 = por %p55, %p56
    %p58 = scmp.ne.s32.totalorder %s49, %s50
    %p59 = scmp.eq.s32.totalorder %s18, 0
    %p60 = por %p58, %p59
    %p61 = scmp.ne.s32.totalorder %s49, %s50
    %p62 = scmp.eq.s32.totalorder %s19, 1
    %p63 = por %p61, %p62
    %p65 = scmp.ne.s32.totalorder %s50, %s64
    %p66 = scmp.eq.s32.totalorder %s19, 0
    %p67 = por %p65, %p66
    %s69 = sadd.s32 %s68, 1
    %p72 = scmp.eq.s32.totalorder %s13, 1
    %p73 = scmp.ne.s32.totalorder %s68, %s70
    %p74 = scmp.eq.s32.totalorder %s13, 0
    %p75 = por %p73, %p74
    %p76 = scmp.ne.s32.totalorder %s68, %s70
    %p77 = scmp.eq.s32.totalorder %s18, 1
    %p78 = por %p76, %p77
    %p79 = scmp.ne.s32.totalorder %s70, %s71
    %p80 = scmp.eq.s32.totalorder %s18, 0
    %p81 = por %p79, %p80
    %p82 = scmp.ne.s32.totalorder %s70, %s71
    %p83 = scmp.eq.s32.totalorder %s19, 1
    %p84 = por %p82, %p83
    %p86 = scmp.ne.s32.totalorder %s71, %s85
    %p87 = scmp.eq.s32.totalorder %s19, 0
    %p88 = por %p86, %p87
    %s90 = sadd.s32 %s89, 1
    %p93 = scmp.eq.s32.totalorder %s13, 1
    %p94 = scmp.ne.s32.totalorder %s89, %s91
    %p95 = scmp.eq.s32.totalorder %s13, 0
    %p96 = por %p94, %p95
    %p97 = scmp.ne.s32.totalorder %s89, %s91
    %p98 = scmp.eq.s32.totalorder %s18, 1
    %p99 = por %p97, %p98
    %p100 = scmp.ne.s32.totalorder %s91, %s92
    %p101 = scmp.eq.s32.totalorder %s18, 0
    %p102 = por %p100, %p101
    %p103 = scmp.ne.s32.totalorder %s91, %s92
    %p104 = scmp.eq.s32.totalorder %s19, 1
    %p105 = por %p103, %p104
    %p107 = scmp.ne.s32.totalorder %s92, %s106
    %p108 = scmp.eq.s32.totalorder %s19, 0
    %p109 = por %p107, %p108
    %s111 = sadd.s32 %s110, 1
    %p114 = scmp.eq.s32.totalorder %s13, 1
    %p115 = scmp.ne.s32.totalorder %s110, %s112
    %p116 = scmp.eq.s32.totalorder %s13, 0
    %p117 = por %p115, %p116
    %p118 = scmp.ne.s32.totalorder %s110, %s112
    %p119 = scmp.eq.s32.totalorder %s18, 1
    %p120 = por %p118, %p119
    %p121 = scmp.ne.s32.totalorder %s112, %s113
    %p122 = scmp.eq.s32.totalorder %s18, 0
    %p123 = por %p121, %p122
    %p124 = scmp.ne.s32.totalorder %s112, %s113
    %p125 = scmp.eq.s32.totalorder %s19, 1
    %p126 = por %p124, %p125
    %p128 = scmp.ne.s32.totalorder %s113, %s127
    %p129 = scmp.eq.s32.totalorder %s19, 0
    %p130 = por %p128, %p129
    %s132 = sadd.s32 %s131, 1
    %p135 = scmp.eq.s32.totalorder %s13, 1
    %p136 = scmp.ne.s32.totalorder %s131, %s133
    %p137 = scmp.eq.s32.totalorder %s13, 0
    %p138 = por %p136, %p137
    %p139 = scmp.ne.s32.totalorder %s131, %s133
    %p140 = scmp.eq.s32.totalorder %s18, 1
    %p141 = por %p139, %p140
    %p142 = scmp.ne.s32.totalorder %s133, %s134
    %p143 = scmp.eq.s32.totalorder %s18, 0
    %p144 = por %p142, %p143
    %p145 = scmp.ne.s32.totalorder %s133, %s134
    %p146 = scmp.eq.s32.totalorder %s19, 1
    %p147 = por %p145, %p146
    %p149 = scmp.ne.s32.totalorder %s134, %s148
    %p150 = scmp.eq.s32.totalorder %s19, 0
    %p151 = por %p149, %p150
    %s153 = sadd.s32 %s152, 1
    %p156 = scmp.eq.s32.totalorder %s13, 1
    %p157 = scmp.ne.s32.totalorder %s152, %s154
    %p158 = scmp.eq.s32.totalorder %s13, 0
    %p159 = por %p157, %p158
    %p160 = scmp.ne.s32.totalorder %s152, %s154
    %p161 = scmp.eq.s32.totalorder %s18, 1
    %p162 = por %p160, %p161
    %p163 = scmp.ne.s32.totalorder %s154, %s155
    %p164 = scmp.eq.s32.totalorder %s18, 0
    %p165 = por %p163, %p164
    %p166 = scmp.ne.s32.totalorder %s154, %s155
    %p167 = scmp.eq.s32.totalorder %s19, 1
    %p168 = por %p166, %p167
    %p170 = scmp.ne.s32.totalorder %s155, %s169
    %p171 = scmp.eq.s32.totalorder %s19, 0
    %p172 = por %p170, %p171
    %s173 = ssub.s32 %s13, %s20
    %p174 = scmp.eq.s32.totalorder %s173, 0
    %s176 = sadd.s32 %s175, 1
    %s177 = scalar_select %p174, %s175, %s176
    %p180 = pneg %p174
    %p181 = scmp.eq.s32.totalorder %s13, 1
    %p182 = por %p180, %p181
    %p183 = scmp.ne.s32.totalorder %s175, %s178
    %p184 = scmp.eq.s32.totalorder %s13, 0
    %p185 = por %p183, %p184
    %p186 = scmp.ne.s32.totalorder %s175, %s178
    %p187 = scmp.eq.s32.totalorder %s18, 1
    %p188 = por %p186, %p187
    %p189 = scmp.ne.s32.totalorder %s178, %s179
    %p190 = scmp.eq.s32.totalorder %s18, 0
    %p191 = por %p189, %p190
    %p192 = scmp.ne.s32.totalorder %s178, %s179
    %p193 = scmp.eq.s32.totalorder %s19, 1
    %p194 = por %p192, %p193
    %p196 = scmp.ne.s32.totalorder %s179, %s195
    %p197 = scmp.eq.s32.totalorder %s19, 0
    %p198 = por %p196, %p197
    %p199 = scmp.le.s32.totalorder 1, %s13
    %p200 = scmp.lt.s32.totalorder %s13, 3
    %p201 = pnand %p199, %p200
    %p202 = pneg %p201
    // Predicated region
    $region9: #{mlp_forward.1} parent=5 // pred_check
      _
    $region10: #{mlp_forward.1} parent=5 // pred_check_branch
      %204 = sbr.rel (%p201) target = $region12
    $region11: #{mlp_forward.1} parent=5 // pred_region
      %s205 = ssub.s32 %s13, 1
      // Predicated region
      $region13: #{mlp_forward.1} parent=11 // pred_check
        %p206 = pneg %p60
      $region14: #{mlp_forward.1} parent=11 // pred_check_branch
        %208 = sbr.rel (%p206) target = $region16
      $region15: #{mlp_forward.1} parent=11 // pred_region
        _
      $region16: #{mlp_forward.1} parent=11 // pred_fallthru
        _
      // Predicated region
      $region17: #{mlp_forward.1} parent=11 // pred_check
        %p209 = pneg %p81
      $region18: #{mlp_forward.1} parent=11 // pred_check_branch
        %211 = sbr.rel (%p209) target = $region20
      $region19: #{mlp_forward.1} parent=11 // pred_region
        _
      $region20: #{mlp_forward.1} parent=11 // pred_fallthru
        _
      // Predicated region
      $region21: #{mlp_forward.1} parent=11 // pred_check
        %p212 = pneg %p102
      $region22: #{mlp_forward.1} parent=11 // pred_check_branch
        %214 = sbr.rel (%p212) target = $region24
      $region23: #{mlp_forward.1} parent=11 // pred_region
        _
      $region24: #{mlp_forward.1} parent=11 // pred_fallthru
        _
      // Predicated region
      $region25: #{mlp_forward.1} parent=11 // pred_check
        %p215 = pneg %p123
      $region26: #{mlp_forward.1} parent=11 // pred_check_branch
        %217 = sbr.rel (%p215) target = $region28
      $region27: #{mlp_forward.1} parent=11 // pred_region
        _
      $region28: #{mlp_forward.1} parent=11 // pred_fallthru
        _
      // Predicated region
      $region29: #{mlp_forward.1} parent=11 // pred_check
        %p218 = pneg %p144
      $region30: #{mlp_forward.1} parent=11 // pred_check_branch
        %220 = sbr.rel (%p218) target = $region32
      $region31: #{mlp_forward.1} parent=11 // pred_region
        _
      $region32: #{mlp_forward.1} parent=11 // pred_fallthru
        _
      // Predicated region
      $region33: #{mlp_forward.1} parent=11 // pred_check
        %p221 = pneg %p165
      $region34: #{mlp_forward.1} parent=11 // pred_check_branch
        %223 = sbr.rel (%p221) target = $region36
      $region35: #{mlp_forward.1} parent=11 // pred_region
        _
      $region36: #{mlp_forward.1} parent=11 // pred_fallthru
        _
    $region12: #{mlp_forward.1} parent=5 // pred_fallthru
      _
    %p224 = scmp.lt.s32.totalorder %s13, 2
    // Predicated region
    $region37: #{mlp_forward.1} parent=5 // pred_check
      %p225 = pneg %p224
    $region38: #{mlp_forward.1} parent=5 // pred_check_branch
      %227 = sbr.rel (%p225) target = $region40
    $region39: #{mlp_forward.1} parent=5 // pred_region
      // Predicated region
      $region41: #{mlp_forward.1} parent=39 // pred_check
        %p228 = pneg %p33
      $region42: #{mlp_forward.1} parent=39 // pred_check_branch
        %230 = sbr.rel (%p228) target = $region44
      $region43: #{mlp_forward.1} parent=39 // pred_region
        %s231 = smul.u32 32, %s13
        %p232 = scmp.lt.s32.totalorder %s231, 63
        %s233 = scalar_select %p232, %s231, 63
        %s234 = smul.addr %s233, 8
        %s235 = scalar_lea.vmem %s0, %s234
        %s236 = smul.u32 32, %s13
      $region44: #{mlp_forward.1} parent=39 // pred_fallthru
        _
    $region40: #{mlp_forward.1} parent=5 // pred_fallthru
      _
    %p237 = scmp.le.s32.totalorder 1, %s13
    %p238 = scmp.lt.s32.totalorder %s13, 3
    %p239 = pnand %p237, %p238
    %p240 = pneg %p239
    // Predicated region
    $region45: #{mlp_forward.1} parent=5 // pred_check
      _
    $region46: #{mlp_forward.1} parent=5 // pred_check_branch
      %242 = sbr.rel (%p239) target = $region48
    $region47: #{mlp_forward.1} parent=5 // pred_region
      %s243 = ssub.s32 %s13, 1
      %s244 = smul.u32 32, %s18
      %p245 = scmp.lt.s32.totalorder %s244, 63
      %s246 = scalar_select %p245, %s244, 63
      %s247 = smul.addr %s246, 8
      %s248 = scalar_lea.vmem %s0, %s247
      %p249 = pneg %p39
      %p250 = pneg %p36
      %p251 = pneg %p60
      %p252 = pneg %p57
      %p253 = pneg %p81
      %p254 = pneg %p78
      %p255 = pneg %p102
      %p256 = pneg %p99
      %p257 = pneg %p123
      %p258 = pneg %p120
      %p259 = pneg %p144
      %p260 = pneg %p141
      %p261 = pneg %p165
      %p262 = pneg %p162
      %p263 = pneg %p191
      %p264 = pneg %p188
      %s265 = smul.u32 32, %s18
      %p266 = scmp.lt.s32.totalorder %s265, 63
      %s267 = scalar_select %p266, %s265, 63
      %s268 = smul.addr %s267, 8
      %s269 = scalar_lea.vmem %s7, %s268
      %s270 = smul.u32 32, %s18
      %p271 = scmp.lt.s32.totalorder %s270, 63
      %s272 = scalar_select %p271, %s270, 63
      %s273 = smul.addr %s272, 8
      %s274 = scalar_lea.vmem %s0, %s273
      %s275 = smul.u32 32, %s18
      %s276 = smul.u32 32, %s18
      %p277 = scmp.lt.s32.totalorder %s276, 63
      %s278 = scalar_select %p277, %s276, 63
      %s279 = smul.addr %s278, 8
      %s280 = scalar_lea.vmem %s7, %s279
      %s281 = smul.u32 32, %s18
      %v282 = vld [vmem:[%s274] sm:$0xff]
      %v283 = vld [vmem:[%s274 + $0x8] sm:$0xff]
      %v284 = vld [vmem:[%s274 + $0x10] sm:$0xff]
      %v285 = vld [vmem:[%s274 + $0x18] sm:$0xff]
      %v286 = vld [vmem:[%s274 + $0x20] sm:$0xff]
      %v287 = vld [vmem:[%s274 + $0x28] sm:$0xff]
      %v288 = vld [vmem:[%s274 + $0x30] sm:$0xff]
      %v289 = vld [vmem:[%s274 + $0x38] sm:$0xff]
      %v290 = vld [vmem:[%s274 + $0x40] sm:$0xff]
      %v291 = vld [vmem:[%s274 + $0x48] sm:$0xff]
      %v292 = vld [vmem:[%s274 + $0x50] sm:$0xff]
      %v293 = vld [vmem:[%s274 + $0x58] sm:$0xff]
      %v294 = vld [vmem:[%s274 + $0x60] sm:$0xff]
      %v295 = vld [vmem:[%s274 + $0x68] sm:$0xff]
      %v296 = vld [vmem:[%s274 + $0x70] sm:$0xff]
      %v297 = vld [vmem:[%s274 + $0x78] sm:$0xff]
      %v298 = vld [vmem:[%s274 + $0x80] sm:$0xff]
      %v299 = vld [vmem:[%s274 + $0x88] sm:$0xff]
      %v300 = vld [vmem:[%s274 + $0x90] sm:$0xff]
      %v301 = vld [vmem:[%s274 + $0x98] sm:$0xff]
      %v302 = vld [vmem:[%s274 + $0xa0] sm:$0xff]
      %v303 = vld [vmem:[%s274 + $0xa8] sm:$0xff]
      %v304 = vld [vmem:[%s274 + $0xb0] sm:$0xff]
      %v305 = vld [vmem:[%s274 + $0xb8] sm:$0xff]
      %v306 = vld [vmem:[%s274 + $0xc0] sm:$0xff]
      %v307 = vld [vmem:[%s274 + $0xc8] sm:$0xff]
      %v308 = vld [vmem:[%s274 + $0xd0] sm:$0xff]
      %v309 = vld [vmem:[%s274 + $0xd8] sm:$0xff]
      %v310 = vld [vmem:[%s274 + $0xe0] sm:$0xff]
      %v311 = vld [vmem:[%s274 + $0xe8] sm:$0xff]
      %v312 = vld [vmem:[%s274 + $0xf0] sm:$0xff]
      %v313 = vld [vmem:[%s274 + $0xf8] sm:$0xff]
      %v314 = vlaneseq
      %v315 = vand.u32 %v314, 127
      %vm316 = vcmp.lt.s32.totalorder %v315, 16
      %v317 = vmul.f32 %v282, %v282
      %v318 = vmul.f32 %v283, %v283
      %v319 = vmul.f32 %v284, %v284
      %v320 = vmul.f32 %v285, %v285
      %v321 = vmul.f32 %v286, %v286
      %v322 = vmul.f32 %v287, %v287
      %v323 = vmul.f32 %v288, %v288
      %v324 = vmul.f32 %v289, %v289
      %v325 = vmul.f32 %v290, %v290
      %v326 = vmul.f32 %v291, %v291
      %v327 = vmul.f32 %v292, %v292
      %v328 = vmul.f32 %v293, %v293
      %v329 = vmul.f32 %v294, %v294
      %v330 = vmul.f32 %v295, %v295
      %v331 = vmul.f32 %v296, %v296
      %v332 = vmul.f32 %v297, %v297
      %v333 = vmul.f32 %v298, %v298
      %v334 = vmul.f32 %v299, %v299
      %v335 = vmul.f32 %v300, %v300
      %v336 = vmul.f32 %v301, %v301
      %v337 = vmul.f32 %v302, %v302
      %v338 = vmul.f32 %v303, %v303
      %v339 = vmul.f32 %v304, %v304
      %v340 = vmul.f32 %v305, %v305
      %v341 = vmul.f32 %v306, %v306
      %v342 = vmul.f32 %v307, %v307
      %v343 = vmul.f32 %v308, %v308
      %v344 = vmul.f32 %v309, %v309
      %v345 = vmul.f32 %v310, %v310
      %v346 = vmul.f32 %v311, %v311
      %v347 = vmul.f32 %v312, %v312
      %v348 = vmul.f32 %v313, %v313
      %v349 = vsel %vm316, %v317, 0.0
      %v350 = vsel %vm316, %v318, 0.0
      %v351 = vsel %vm316, %v319, 0.0
      %v352 = vsel %vm316, %v320, 0.0
      %v353 = vsel %vm316, %v321, 0.0
      %v354 = vsel %vm316, %v322, 0.0
      %v355 = vsel %vm316, %v323, 0.0
      %v356 = vsel %vm316, %v324, 0.0
      %v357 = vsel %vm316, %v325, 0.0
      %v358 = vsel %vm316, %v326, 0.0
      %v359 = vsel %vm316, %v327, 0.0
      %v360 = vsel %vm316, %v328, 0.0
      %v361 = vsel %vm316, %v329, 0.0
      %v362 = vsel %vm316, %v330, 0.0
      %v363 = vsel %vm316, %v331, 0.0
      %v364 = vsel %vm316, %v332, 0.0
      %v365 = vsel %vm316, %v333, 0.0
      %v366 = vsel %vm316, %v334, 0.0
      %v367 = vsel %vm316, %v335, 0.0
      %v368 = vsel %vm316, %v336, 0.0
      %v369 = vsel %vm316, %v337, 0.0
      %v370 = vsel %vm316, %v338, 0.0
      %v371 = vsel %vm316, %v339, 0.0
      %v372 = vsel %vm316, %v340, 0.0
      %v373 = vsel %vm316, %v341, 0.0
      %v374 = vsel %vm316, %v342, 0.0
      %v375 = vsel %vm316, %v343, 0.0
      %v376 = vsel %vm316, %v344, 0.0
      %v377 = vsel %vm316, %v345, 0.0
      %v378 = vsel %vm316, %v346, 0.0
      %v379 = vsel %vm316, %v347, 0.0
      %v380 = vsel %vm316, %v348, 0.0
      %vm381 = vcmask 261120
      %v382 = vsel %vm381, %v349, 0.0
      %383 = vadd.xlane.f32.xlu0 %v382
      %v384 = vpop.xlane.xlu0 %383
      %v385 = vsel %vm381, %v350, 0.0
      %386 = vadd.xlane.f32.xlu0 %v385
      %v387 = vpop.xlane.xlu0 %386
      %v388 = vsel %vm381, %v351, 0.0
      %389 = vadd.xlane.f32.xlu0 %v388
      %v390 = vpop.xlane.xlu0 %389
      %v391 = vsel %vm381, %v352, 0.0
      %392 = vadd.xlane.f32.xlu0 %v391
      %v393 = vpop.xlane.xlu0 %392
      %v394 = vsel %vm381, %v353, 0.0
      %395 = vadd.xlane.f32.xlu0 %v394
      %v396 = vpop.xlane.xlu0 %395
      %v397 = vsel %vm381, %v354, 0.0
      %398 = vadd.xlane.f32.xlu0 %v397
      %v399 = vpop.xlane.xlu0 %398
      %v400 = vsel %vm381, %v355, 0.0
      %401 = vadd.xlane.f32.xlu0 %v400
      %v402 = vpop.xlane.xlu0 %401
      %v403 = vsel %vm381, %v356, 0.0
      %404 = vadd.xlane.f32.xlu0 %v403
      %v405 = vpop.xlane.xlu0 %404
      %v406 = vsel %vm381, %v357, 0.0
      %407 = vadd.xlane.f32.xlu0 %v406
      %v408 = vpop.xlane.xlu0 %407
      %v409 = vsel %vm381, %v358, 0.0
      %410 = vadd.xlane.f32.xlu0 %v409
      %v411 = vpop.xlane.xlu0 %410
      %v412 = vsel %vm381, %v359, 0.0
      %413 = vadd.xlane.f32.xlu0 %v412
      %v414 = vpop.xlane.xlu0 %413
      %v415 = vsel %vm381, %v360, 0.0
      %416 = vadd.xlane.f32.xlu0 %v415
      %v417 = vpop.xlane.xlu0 %416
      %v418 = vsel %vm381, %v361, 0.0
      %419 = vadd.xlane.f32.xlu0 %v418
      %v420 = vpop.xlane.xlu0 %419
      %v421 = vsel %vm381, %v362, 0.0
      %422 = vadd.xlane.f32.xlu0 %v421
      %v423 = vpop.xlane.xlu0 %422
      %v424 = vsel %vm381, %v363, 0.0
      %425 = vadd.xlane.f32.xlu0 %v424
      %v426 = vpop.xlane.xlu0 %425
      %v427 = vsel %vm381, %v364, 0.0
      %428 = vadd.xlane.f32.xlu0 %v427
      %v429 = vpop.xlane.xlu0 %428
      %v430 = vsel %vm381, %v365, 0.0
      %431 = vadd.xlane.f32.xlu0 %v430
      %v432 = vpop.xlane.xlu0 %431
      %v433 = vsel %vm381, %v366, 0.0
      %434 = vadd.xlane.f32.xlu0 %v433
      %v435 = vpop.xlane.xlu0 %434
      %v436 = vsel %vm381, %v367, 0.0
      %437 = vadd.xlane.f32.xlu0 %v436
      %v438 = vpop.xlane.xlu0 %437
      %v439 = vsel %vm381, %v368, 0.0
      %440 = vadd.xlane.f32.xlu0 %v439
      %v441 = vpop.xlane.xlu0 %440
      %v442 = vsel %vm381, %v369, 0.0
      %443 = vadd.xlane.f32.xlu0 %v442
      %v444 = vpop.xlane.xlu0 %443
      %v445 = vsel %vm381, %v370, 0.0
      %446 = vadd.xlane.f32.xlu0 %v445
      %v447 = vpop.xlane.xlu0 %446
      %v448 = vsel %vm381, %v371, 0.0
      %449 = vadd.xlane.f32.xlu0 %v448
      %v450 = vpop.xlane.xlu0 %449
      %v451 = vsel %vm381, %v372, 0.0
      %452 = vadd.xlane.f32.xlu0 %v451
      %v453 = vpop.xlane.xlu0 %452
      %v454 = vsel %vm381, %v373, 0.0
      %455 = vadd.xlane.f32.xlu0 %v454
      %v456 = vpop.xlane.xlu0 %455
      %v457 = vsel %vm381, %v374, 0.0
      %458 = vadd.xlane.f32.xlu0 %v457
      %v459 = vpop.xlane.xlu0 %458
      %v460 = vsel %vm381, %v375, 0.0
      %461 = vadd.xlane.f32.xlu0 %v460
      %v462 = vpop.xlane.xlu0 %461
      %v463 = vsel %vm381, %v376, 0.0
      %464 = vadd.xlane.f32.xlu0 %v463
      %v465 = vpop.xlane.xlu0 %464
      %v466 = vsel %vm381, %v377, 0.0
      %467 = vadd.xlane.f32.xlu0 %v466
      %v468 = vpop.xlane.xlu0 %467
      %v469 = vsel %vm381, %v378, 0.0
      %470 = vadd.xlane.f32.xlu0 %v469
      %v471 = vpop.xlane.xlu0 %470
      %v472 = vsel %vm381, %v379, 0.0
      %473 = vadd.xlane.f32.xlu0 %v472
      %v474 = vpop.xlane.xlu0 %473
      %v475 = vsel %vm381, %v380, 0.0
      %476 = vadd.xlane.f32.xlu0 %v475
      %v477 = vpop.xlane.xlu0 %476
      %v478 = vsel %vm316, 0.0, %v317
      %v479 = vsel %vm316, 0.0, %v318
      %v480 = vsel %vm316, 0.0, %v319
      %v481 = vsel %vm316, 0.0, %v320
      %v482 = vsel %vm316, 0.0, %v321
      %v483 = vsel %vm316, 0.0, %v322
      %v484 = vsel %vm316, 0.0, %v323
      %v485 = vsel %vm316, 0.0, %v324
      %v486 = vsel %vm316, 0.0, %v325
      %v487 = vsel %vm316, 0.0, %v326
      %v488 = vsel %vm316, 0.0, %v327
      %v489 = vsel %vm316, 0.0, %v328
      %v490 = vsel %vm316, 0.0, %v329
      %v491 = vsel %vm316, 0.0, %v330
      %v492 = vsel %vm316, 0.0, %v331
      %v493 = vsel %vm316, 0.0, %v332
      %v494 = vsel %vm316, 0.0, %v333
      %v495 = vsel %vm316, 0.0, %v334
      %v496 = vsel %vm316, 0.0, %v335
      %v497 = vsel %vm316, 0.0, %v336
      %v498 = vsel %vm316, 0.0, %v337
      %v499 = vsel %vm316, 0.0, %v338
      %v500 = vsel %vm316, 0.0, %v339
      %v501 = vsel %vm316, 0.0, %v340
      %v502 = vsel %vm316, 0.0, %v341
      %v503 = vsel %vm316, 0.0, %v342
      %v504 = vsel %vm316, 0.0, %v343
      %v505 = vsel %vm316, 0.0, %v344
      %v506 = vsel %vm316, 0.0, %v345
      %v507 = vsel %vm316, 0.0, %v346
      %v508 = vsel %vm316, 0.0, %v347
      %v509 = vsel %vm316, 0.0, %v348
      %v510 = vsel %vm381, %v478, 0.0
      %511 = vadd.xlane.f32.xlu0 %v510
      %v512 = vpop.xlane.xlu0 %511
      %v513 = vsel %vm381, %v479, 0.0
      %514 = vadd.xlane.f32.xlu0 %v513
      %v515 = vpop.xlane.xlu0 %514
      %v516 = vsel %vm381, %v480, 0.0
      %517 = vadd.xlane.f32.xlu0 %v516
      %v518 = vpop.xlane.xlu0 %517
      %v519 = vsel %vm381, %v481, 0.0
      %520 = vadd.xlane.f32.xlu0 %v519
      %v521 = vpop.xlane.xlu0 %520
      %v522 = vsel %vm381, %v482, 0.0
      %523 = vadd.xlane.f32.xlu0 %v522
      %v524 = vpop.xlane.xlu0 %523
      %v525 = vsel %vm381, %v483, 0.0
      %526 = vadd.xlane.f32.xlu0 %v525
      %v527 = vpop.xlane.xlu0 %526
      %v528 = vsel %vm381, %v484, 0.0
      %529 = vadd.xlane.f32.xlu0 %v528
      %v530 = vpop.xlane.xlu0 %529
      %v531 = vsel %vm381, %v485, 0.0
      %532 = vadd.xlane.f32.xlu0 %v531
      %v533 = vpop.xlane.xlu0 %532
      %v534 = vsel %vm381, %v486, 0.0
      %535 = vadd.xlane.f32.xlu0 %v534
      %v536 = vpop.xlane.xlu0 %535
      %v537 = vsel %vm381, %v487, 0.0
      %538 = vadd.xlane.f32.xlu0 %v537
      %v539 = vpop.xlane.xlu0 %538
      %v540 = vsel %vm381, %v488, 0.0
      %541 = vadd.xlane.f32.xlu0 %v540
      %v542 = vpop.xlane.xlu0 %541
      %v543 = vsel %vm381, %v489, 0.0
      %544 = vadd.xlane.f32.xlu0 %v543
      %v545 = vpop.xlane.xlu0 %544
      %v546 = vsel %vm381, %v490, 0.0
      %547 = vadd.xlane.f32.xlu0 %v546
      %v548 = vpop.xlane.xlu0 %547
      %v549 = vsel %vm381, %v491, 0.0
      %550 = vadd.xlane.f32.xlu0 %v549
      %v551 = vpop.xlane.xlu0 %550
      %v552 = vsel %vm381, %v492, 0.0
      %553 = vadd.xlane.f32.xlu0 %v552
      %v554 = vpop.xlane.xlu0 %553
      %v555 = vsel %vm381, %v493, 0.0
      %556 = vadd.xlane.f32.xlu0 %v555
      %v557 = vpop.xlane.xlu0 %556
      %v558 = vsel %vm381, %v494, 0.0
      %559 = vadd.xlane.f32.xlu0 %v558
      %v560 = vpop.xlane.xlu0 %559
      %v561 = vsel %vm381, %v495, 0.0
      %562 = vadd.xlane.f32.xlu0 %v561
      %v563 = vpop.xlane.xlu0 %562
      %v564 = vsel %vm381, %v496, 0.0
      %565 = vadd.xlane.f32.xlu0 %v564
      %v566 = vpop.xlane.xlu0 %565
      %v567 = vsel %vm381, %v497, 0.0
      %568 = vadd.xlane.f32.xlu0 %v567
      %v569 = vpop.xlane.xlu0 %568
      %v570 = vsel %vm381, %v498, 0.0
      %571 = vadd.xlane.f32.xlu0 %v570
      %v572 = vpop.xlane.xlu0 %571
      %v573 = vsel %vm381, %v499, 0.0
      %574 = vadd.xlane.f32.xlu0 %v573
      %v575 = vpop.xlane.xlu0 %574
      %v576 = vsel %vm381, %v500, 0.0
      %577 = vadd.xlane.f32.xlu0 %v576
      %v578 = vpop.xlane.xlu0 %577
      %v579 = vsel %vm381, %v501, 0.0
      %580 = vadd.xlane.f32.xlu0 %v579
      %v581 = vpop.xlane.xlu0 %580
      %v582 = vsel %vm381, %v502, 0.0
      %583 = vadd.xlane.f32.xlu0 %v582
      %v584 = vpop.xlane.xlu0 %583
      %v585 = vsel %vm381, %v503, 0.0
      %586 = vadd.xlane.f32.xlu0 %v585
      %v587 = vpop.xlane.xlu0 %586
      %v588 = vsel %vm381, %v504, 0.0
      %589 = vadd.xlane.f32.xlu0 %v588
      %v590 = vpop.xlane.xlu0 %589
      %v591 = vsel %vm381, %v505, 0.0
      %592 = vadd.xlane.f32.xlu0 %v591
      %v593 = vpop.xlane.xlu0 %592
      %v594 = vsel %vm381, %v506, 0.0
      %595 = vadd.xlane.f32.xlu0 %v594
      %v596 = vpop.xlane.xlu0 %595
      %v597 = vsel %vm381, %v507, 0.0
      %598 = vadd.xlane.f32.xlu0 %v597
      %v599 = vpop.xlane.xlu0 %598
      %v600 = vsel %vm381, %v508, 0.0
      %601 = vadd.xlane.f32.xlu0 %v600
      %v602 = vpop.xlane.xlu0 %601
      %v603 = vsel %vm381, %v509, 0.0
      %604 = vadd.xlane.f32.xlu0 %v603
      %v605 = vpop.xlane.xlu0 %604
      %v606 = vmax.f32 %v384, 1e-24
      %v607 = vmax.f32 %v387, 1e-24
      %v608 = vmax.f32 %v390, 1e-24
      %v609 = vmax.f32 %v393, 1e-24
      %v610 = vmax.f32 %v396, 1e-24
      %v611 = vmax.f32 %v399, 1e-24
      %v612 = vmax.f32 %v402, 1e-24
      %v613 = vmax.f32 %v405, 1e-24
      %v614 = vmax.f32 %v408, 1e-24
      %v615 = vmax.f32 %v411, 1e-24
      %v616 = vmax.f32 %v414, 1e-24
      %v617 = vmax.f32 %v417, 1e-24
      %v618 = vmax.f32 %v420, 1e-24
      %v619 = vmax.f32 %v423, 1e-24
      %v620 = vmax.f32 %v426, 1e-24
      %v621 = vmax.f32 %v429, 1e-24
      %v622 = vmax.f32 %v432, 1e-24
      %v623 = vmax.f32 %v435, 1e-24
      %v624 = vmax.f32 %v438, 1e-24
      %v625 = vmax.f32 %v441, 1e-24
      %v626 = vmax.f32 %v444, 1e-24
      %v627 = vmax.f32 %v447, 1e-24
      %v628 = vmax.f32 %v450, 1e-24
      %v629 = vmax.f32 %v453, 1e-24
      %v630 = vmax.f32 %v456, 1e-24
      %v631 = vmax.f32 %v459, 1e-24
      %v632 = vmax.f32 %v462, 1e-24
      %v633 = vmax.f32 %v465, 1e-24
      %v634 = vmax.f32 %v468, 1e-24
      %v635 = vmax.f32 %v471, 1e-24
      %v636 = vmax.f32 %v474, 1e-24
      %v637 = vmax.f32 %v477, 1e-24
      %v638 = vrsqrt.pop %v606
      %v639 = vrsqrt.pop %v607
      %v640 = vrsqrt.pop %v608
      %v641 = vrsqrt.pop %v609
      %v642 = vrsqrt.pop %v610
      %v643 = vrsqrt.pop %v611
      %v644 = vrsqrt.pop %v612
      %v645 = vrsqrt.pop %v613
      %v646 = vrsqrt.pop %v614
      %v647 = vrsqrt.pop %v615
      %v648 = vrsqrt.pop %v616
      %v649 = vrsqrt.pop %v617
      %v650 = vrsqrt.pop %v618
      %v651 = vrsqrt.pop %v619
      %v652 = vrsqrt.pop %v620
      %v653 = vrsqrt.pop %v621
      %v654 = vrsqrt.pop %v622
      %v655 = vrsqrt.pop %v623
      %v656 = vrsqrt.pop %v624
      %v657 = vrsqrt.pop %v625
      %v658 = vrsqrt.pop %v626
      %v659 = vrsqrt.pop %v627
      %v660 = vrsqrt.pop %v628
      %v661 = vrsqrt.pop %v629
      %v662 = vrsqrt.pop %v630
      %v663 = vrsqrt.pop %v631
      %v664 = vrsqrt.pop %v632
      %v665 = vrsqrt.pop %v633
      %v666 = vrsqrt.pop %v634
      %v667 = vrsqrt.pop %v635
      %v668 = vrsqrt.pop %v636
      %v669 = vrsqrt.pop %v637
      %v670 = vmax.f32 %v512, 1e-24
      %v671 = vmax.f32 %v515, 1e-24
      %v672 = vmax.f32 %v518, 1e-24
      %v673 = vmax.f32 %v521, 1e-24
      %v674 = vmax.f32 %v524, 1e-24
      %v675 = vmax.f32 %v527, 1e-24
      %v676 = vmax.f32 %v530, 1e-24
      %v677 = vmax.f32 %v533, 1e-24
      %v678 = vmax.f32 %v536, 1e-24
      %v679 = vmax.f32 %v539, 1e-24
      %v680 = vmax.f32 %v542, 1e-24
      %v681 = vmax.f32 %v545, 1e-24
      %v682 = vmax.f32 %v548, 1e-24
      %v683 = vmax.f32 %v551, 1e-24
      %v684 = vmax.f32 %v554, 1e-24
      %v685 = vmax.f32 %v557, 1e-24
      %v686 = vmax.f32 %v560, 1e-24
      %v687 = vmax.f32 %v563, 1e-24
      %v688 = vmax.f32 %v566, 1e-24
      %v689 = vmax.f32 %v569, 1e-24
      %v690 = vmax.f32 %v572, 1e-24
      %v691 = vmax.f32 %v575, 1e-24
      %v692 = vmax.f32 %v578, 1e-24
      %v693 = vmax.f32 %v581, 1e-24
      %v694 = vmax.f32 %v584, 1e-24
      %v695 = vmax.f32 %v587, 1e-24
      %v696 = vmax.f32 %v590, 1e-24
      %v697 = vmax.f32 %v593, 1e-24
      %v698 = vmax.f32 %v596, 1e-24
      %v699 = vmax.f32 %v599, 1e-24
      %v700 = vmax.f32 %v602, 1e-24
      %v701 = vmax.f32 %v605, 1e-24
      %v702 = vrsqrt.pop %v670
      %v703 = vrsqrt.pop %v671
      %v704 = vrsqrt.pop %v672
      %v705 = vrsqrt.pop %v673
      %v706 = vrsqrt.pop %v674
      %v707 = vrsqrt.pop %v675
      %v708 = vrsqrt.pop %v676
      %v709 = vrsqrt.pop %v677
      %v710 = vrsqrt.pop %v678
      %v711 = vrsqrt.pop %v679
      %v712 = vrsqrt.pop %v680
      %v713 = vrsqrt.pop %v681
      %v714 = vrsqrt.pop %v682
      %v715 = vrsqrt.pop %v683
      %v716 = vrsqrt.pop %v684
      %v717 = vrsqrt.pop %v685
      %v718 = vrsqrt.pop %v686
      %v719 = vrsqrt.pop %v687
      %v720 = vrsqrt.pop %v688
      %v721 = vrsqrt.pop %v689
      %v722 = vrsqrt.pop %v690
      %v723 = vrsqrt.pop %v691
      %v724 = vrsqrt.pop %v692
      %v725 = vrsqrt.pop %v693
      %v726 = vrsqrt.pop %v694
      %v727 = vrsqrt.pop %v695
      %v728 = vrsqrt.pop %v696
      %v729 = vrsqrt.pop %v697
      %v730 = vrsqrt.pop %v698
      %v731 = vrsqrt.pop %v699
      %v732 = vrsqrt.pop %v700
      %v733 = vrsqrt.pop %v701
      %v734 = vsel %vm316, %v638, %v702
      %v735 = vsel %vm316, %v639, %v703
      %v736 = vsel %vm316, %v640, %v704
      %v737 = vsel %vm316, %v641, %v705
      %v738 = vsel %vm316, %v642, %v706
      %v739 = vsel %vm316, %v643, %v707
      %v740 = vsel %vm316, %v644, %v708
      %v741 = vsel %vm316, %v645, %v709
      %v742 = vsel %vm316, %v646, %v710
      %v743 = vsel %vm316, %v647, %v711
      %v744 = vsel %vm316, %v648, %v712
      %v745 = vsel %vm316, %v649, %v713
      %v746 = vsel %vm316, %v650, %v714
      %v747 = vsel %vm316, %v651, %v715
      %v748 = vsel %vm316, %v652, %v716
      %v749 = vsel %vm316, %v653, %v717
      %v750 = vsel %vm316, %v654, %v718
      %v751 = vsel %vm316, %v655, %v719
      %v752 = vsel %vm316, %v656, %v720
      %v753 = vsel %vm316, %v657, %v721
      %v754 = vsel %vm316, %v658, %v722
      %v755 = vsel %vm316, %v659, %v723
      %v756 = vsel %vm316, %v660, %v724
      %v757 = vsel %vm316, %v661, %v725
      %v758 = vsel %vm316, %v662, %v726
      %v759 = vsel %vm316, %v663, %v727
      %v760 = vsel %vm316, %v664, %v728
      %v761 = vsel %vm316, %v665, %v729
      %v762 = vsel %vm316, %v666, %v730
      %v763 = vsel %vm316, %v667, %v731
      %v764 = vsel %vm316, %v668, %v732
      %v765 = vsel %vm316, %v669, %v733
      %v766 = vmul.f32 %v282, %v734
      %v767 = vmul.f32 %v283, %v735
      %v768 = vmul.f32 %v284, %v736
      %v769 = vmul.f32 %v285, %v737
      %v770 = vmul.f32 %v286, %v738
      %v771 = vmul.f32 %v287, %v739
      %v772 = vmul.f32 %v288, %v740
      %v773 = vmul.f32 %v289, %v741
      %v774 = vmul.f32 %v290, %v742
      %v775 = vmul.f32 %v291, %v743
      %v776 = vmul.f32 %v292, %v744
      %v777 = vmul.f32 %v293, %v745
      %v778 = vmul.f32 %v294, %v746
      %v779 = vmul.f32 %v295, %v747
      %v780 = vmul.f32 %v296, %v748
      %v781 = vmul.f32 %v297, %v749
      %v782 = vmul.f32 %v298, %v750
      %v783 = vmul.f32 %v299, %v751
      %v784 = vmul.f32 %v300, %v752
      %v785 = vmul.f32 %v301, %v753
      %v786 = vmul.f32 %v302, %v754
      %v787 = vmul.f32 %v303, %v755
      %v788 = vmul.f32 %v304, %v756
      %v789 = vmul.f32 %v305, %v757
      %v790 = vmul.f32 %v306, %v758
      %v791 = vmul.f32 %v307, %v759
      %v792 = vmul.f32 %v308, %v760
      %v793 = vmul.f32 %v309, %v761
      %v794 = vmul.f32 %v310, %v762
      %v795 = vmul.f32 %v311, %v763
      %v796 = vmul.f32 %v312, %v764
      %v797 = vmul.f32 %v313, %v765
      %v798 = vld [vmem:[%s1] sm:$0xff]
      %v799 = vld [vmem:[%s1 + $0x8] sm:$0xff]
      %v800 = vld [vmem:[%s1 + $0x10] sm:$0xff]
      %v801 = vld [vmem:[%s1 + $0x18] sm:$0xff]
      %v802 = vld [vmem:[%s2] sm:$0x1]
      %v804 = vlaneseq
      %v805 = vshrl.u32 %v804, 7
      %v806 = vsub.s32 0, %v805
      %v807 = vrot.slane %v802, %v806
      %v810 = vsel %vm381, %v766, 0
      %v813 = vsel %vm381, %v767, 0
      %v816 = vsel %vm381, %v768, 0
      %v819 = vsel %vm381, %v769, 0
      %v822 = vsel %vm381, %v770, 0
      %v825 = vsel %vm381, %v771, 0
      %v828 = vsel %vm381, %v772, 0
      %v831 = vsel %vm381, %v773, 0
      %v834 = vsel %vm381, %v774, 0
      %v837 = vsel %vm381, %v775, 0
      %v840 = vsel %vm381, %v776, 0
      %v843 = vsel %vm381, %v777, 0
      %v846 = vsel %vm381, %v778, 0
      %v849 = vsel %vm381, %v779, 0
      %v852 = vsel %vm381, %v780, 0
      %v855 = vsel %vm381, %v781, 0
      %v858 = vsel %vm381, %v782, 0
      %v861 = vsel %vm381, %v783, 0
      %v864 = vsel %vm381, %v784, 0
      %v867 = vsel %vm381, %v785, 0
      %v870 = vsel %vm381, %v786, 0
      %v873 = vsel %vm381, %v787, 0
      %v876 = vsel %vm381, %v788, 0
      %v879 = vsel %vm381, %v789, 0
      %v882 = vsel %vm381, %v790, 0
      %v885 = vsel %vm381, %v791, 0
      %v888 = vsel %vm381, %v792, 0
      %v891 = vsel %vm381, %v793, 0
      %v894 = vsel %vm381, %v794, 0
      %v897 = vsel %vm381, %v795, 0
      %v900 = vsel %vm381, %v796, 0
      %v903 = vsel %vm381, %v797, 0
      %905 = vmatprep.subr.mxu0 0.0
      %906 = vmatpush1.msra.mxu0 %v798
      %907 = vmatprep.subr.mxu0 0.0
      %908 = vmatpush1.msra.mxu0 %v799
      %909 = vmatprep.subr.mxu0 0.0
      %910 = vmatpush1.msra.mxu0 %v800
      %911 = vmatprep.subr.mxu0 0.0
      %912 = vmatpush1.msra.mxu0 %v801
      %913 = vmatprep.subr.mxu0 0.0
      %914 = vmatpush1.msra.mxu0 0.0
      %915 = vmatprep.subr.mxu0 0.0
      %916 = vmatpush1.msra.mxu0 0.0
      %917 = vmatprep.subr.mxu0 0.0
      %918 = vmatpush1.msra.mxu0 0.0
      %919 = vmatprep.subr.mxu0 0.0
      %920 = vmatpush1.msra.mxu0 0.0
      %921 = vmatprep.subr.mxu0 0.0
      %922 = vmatpush1.msra.mxu0 0.0
      %923 = vmatprep.subr.mxu0 0.0
      %924 = vmatpush1.msra.mxu0 0.0
      %925 = vmatprep.subr.mxu0 0.0
      %926 = vmatpush1.msra.mxu0 0.0
      %927 = vmatprep.subr.mxu0 0.0
      %928 = vmatpush1.msra.mxu0 0.0
      %929 = vmatprep.subr.mxu0 0.0
      %930 = vmatpush1.msra.mxu0 0.0
      %931 = vmatprep.subr.mxu0 0.0
      %932 = vmatpush1.msra.mxu0 0.0
      %933 = vmatprep.subr.mxu0 0.0
      %934 = vmatpush1.msra.mxu0 0.0
      %935 = vmatprep.subr.mxu0 0.0
      %936 = vmatpush1.msra.mxu0 0.0
      %937 = vmatprep.subr.mxu0 0.0
      %938 = vmatpush1.msra.mxu0 0.0
      %939 = vmatprep.subr.mxu0 0.0
      %940 = vmatpush1.msra.mxu0 0.0
      %941 = vmatprep.subr.mxu0 0.0
      %942 = vmatpush1.msra.mxu0 0.0
      %943 = vmatprep.subr.mxu0 0.0
      %944 = vmatpush1.msra.mxu0 0.0
      %945 = vmatprep.subr.mxu0 0.0
      %946 = vmatpush1.msra.mxu0 0.0
      %947 = vmatprep.subr.mxu0 0.0
      %948 = vmatpush1.msra.mxu0 0.0
      %949 = vmatprep.subr.mxu0 0.0
      %950 = vmatpush1.msra.mxu0 0.0
      %951 = vmatprep.subr.mxu0 0.0
      %952 = vmatpush1.msra.mxu0 0.0
      %953 = vmatprep.subr.mxu0 0.0
      %954 = vmatpush1.msra.mxu0 0.0
      %955 = vmatprep.subr.mxu0 0.0
      %956 = vmatpush1.msra.mxu0 0.0
      %957 = vmatprep.subr.mxu0 0.0
      %958 = vmatpush1.msra.mxu0 0.0
      %959 = vmatprep.subr.mxu0 0.0
      %960 = vmatpush1.msra.mxu0 0.0
      %961 = vmatprep.subr.mxu0 0.0
      %962 = vmatpush1.msra.mxu0 0.0
      %963 = vmatprep.subr.mxu0 0.0
      %964 = vmatpush1.msra.mxu0 0.0
      %965 = vmatprep.subr.mxu0 0.0
      %966 = vmatpush1.msra.mxu0 0.0
      %967 = vmatprep.subr.mxu0 0.0
      %968 = vmatpush1.msra.mxu0 0.0
      %969 = vmatprep.mubr.f32.mxu0 0.0
      %970 = vmatmul.mubr.f32.gmra.mrb[0].mxu0 %v810
      %v971 = vpop.f32.mrb[0].mxu0
      %v972 = vadd.f32 %v807, %v971
      %v973 = vpop.f32.mrb[0].mxu0
      %974 = vmatprep.mubr.f32.mxu0 0.0
      %975 = vmatmul.mubr.f32.gmra.mrb[0].mxu0 %v813
      %v976 = vpop.f32.mrb[0].mxu0
      %v977 = vadd.f32 %v807, %v976
      %v978 = vpop.f32.mrb[0].mxu0
      %979 = vmatprep.mubr.f32.mxu0 0.0
      %980 = vmatmul.mubr.f32.gmra.mrb[0].mxu0 %v816
      %v981 = vpop.f32.mrb[0].mxu0
      %v982 = vadd.f32 %v807, %v981
      %v983 = vpop.f32.mrb[0].mxu0
      %984 = vmatprep.mubr.f32.mxu0 0.0
      %985 = vmatmul.mubr.f32.gmra.mrb[0].mxu0 %v819
      %v986 = vpop.f32.mrb[0].mxu0
      %v987 = vadd.f32 %v807, %v986
      %v988 = vpop.f32.mrb[0].mxu0
      %989 = vmatprep.mubr.f32.mxu0 0.0
      %990 = vmatmul.mubr.f32.gmra.mrb[0].mxu0 %v822
      %v991 = vpop.f32.mrb[0].mxu0
      %v992 = vadd.f32 %v807, %v991
      %v993 = vpop.f32.mrb[0].mxu0
      %994 = vmatprep.mubr.f32.mxu0 0.0
      %995 = vmatmul.mubr.f32.gmra.mrb[0].mxu0 %v825
      %v996 = vpop.f32.mrb[0].mxu0
      %v997 = vadd.f32 %v807, %v996
      %v998 = vpop.f32.mrb[0].mxu0
      %999 = vmatprep.mubr.f32.mxu0 0.0
      %1000 = vmatmul.mubr.f32.gmra.mrb[0].mxu0 %v828
      %v1001 = vpop.f32.mrb[0].mxu0
      %v1002 = vadd.f32 %v807, %v1001
      %v1003 = vpop.f32.mrb[0].mxu0
      %1004 = vmatprep.mubr.f32.mxu0 0.0
      %1005 = vmatmul.mubr.f32.gmra.mrb[0].mxu0 %v831
      %v1006 = vpop.f32.mrb[0].mxu0
      %v1007 = vadd.f32 %v807, %v1006
      %v1008 = vpop.f32.mrb[0].mxu0
      %1009 = vmatprep.mubr.f32.mxu0 0.0
      %1010 = vmatmul.mubr.f32.gmra.mrb[0].mxu0 %v834
      %v1011 = vpop.f32.mrb[0].mxu0
      %v1012 = vadd.f32 %v807, %v1011
      %v1013 = vpop.f32.mrb[0].mxu0
      %1014 = vmatprep.mubr.f32.mxu0 0.0
      %1015 = vmatmul.mubr.f32.gmra.mrb[0].mxu0 %v837
      %v1016 = vpop.f32.mrb[0].mxu0
      %v1017 = vadd.f32 %v807, %v1016
      %v1018 = vpop.f32.mrb[0].mxu0
      %1019 = vmatprep.mubr.f32.mxu0 0.0
      %1020 = vmatmul.mubr.f32.gmra.mrb[0].mxu0 %v840
      %v1021 = vpop.f32.mrb[0].mxu0
      %v1022 = vadd.f32 %v807, %v1021
      %v1023 = vpop.f32.mrb[0].mxu0
      %1024 = vmatprep.mubr.f32.mxu0 0.0
      %1025 = vmatmul.mubr.f32.gmra.mrb[0].mxu0 %v843
      %v1026 = vpop.f32.mrb[0].mxu0
      %v1027 = vadd.f32 %v807, %v1026
      %v1028 = vpop.f32.mrb[0].mxu0
      %1029 = vmatprep.mubr.f32.mxu0 0.0
      %1030 = vmatmul.mubr.f32.gmra.mrb[0].mxu0 %v846
      %v1031 = vpop.f32.mrb[0].mxu0
      %v1032 = vadd.f32 %v807, %v1031
      %v1033 = vpop.f32.mrb[0].mxu0
      %1034 = vmatprep.mubr.f32.mxu0 0.0
      %1035 = vmatmul.mubr.f32.gmra.mrb[0].mxu0 %v849
      %v1036 = vpop.f32.mrb[0].mxu0
      %v1037 = vadd.f32 %v807, %v1036
      %v1038 = vpop.f32.mrb[0].mxu0
      %1039 = vmatprep.mubr.f32.mxu0 0.0
      %1040 = vmatmul.mubr.f32.gmra.mrb[0].mxu0 %v852
      %v1041 = vpop.f32.mrb[0].mxu0
      %v1042 = vadd.f32 %v807, %v1041
      %v1043 = vpop.f32.mrb[0].mxu0
      %1044 = vmatprep.mubr.f32.mxu0 0.0
      %1045 = vmatmul.mubr.f32.gmra.mrb[0].mxu0 %v855
      %v1046 = vpop.f32.mrb[0].mxu0
      %v1047 = vadd.f32 %v807, %v1046
      %v1048 = vpop.f32.mrb[0].mxu0
      %1049 = vmatprep.mubr.f32.mxu0 0.0
      %1050 = vmatmul.mubr.f32.gmra.mrb[0].mxu0 %v858
      %v1051 = vpop.f32.mrb[0].mxu0
      %v1052 = vadd.f32 %v807, %v1051
      %v1053 = vpop.f32.mrb[0].mxu0
      %1054 = vmatprep.mubr.f32.mxu0 0.0
      %1055 = vmatmul.mubr.f32.gmra.mrb[0].mxu0 %v861
      %v1056 = vpop.f32.mrb[0].mxu0
      %v1057 = vadd.f32 %v807, %v1056
      %v1058 = vpop.f32.mrb[0].mxu0
      %1059 = vmatprep.mubr.f32.mxu0 0.0
      %1060 = vmatmul.mubr.f32.gmra.mrb[0].mxu0 %v864
      %v1061 = vpop.f32.mrb[0].mxu0
      %v1062 = vadd.f32 %v807, %v1061
      %v1063 = vpop.f32.mrb[0].mxu0
      %1064 = vmatprep.mubr.f32.mxu0 0.0
      %1065 = vmatmul.mubr.f32.gmra.mrb[0].mxu0 %v867
      %v1066 = vpop.f32.mrb[0].mxu0
      %v1067 = vadd.f32 %v807, %v1066
      %v1068 = vpop.f32.mrb[0].mxu0
      %1069 = vmatprep.mubr.f32.mxu0 0.0
      %1070 = vmatmul.mubr.f32.gmra.mrb[0].mxu0 %v870
      %v1071 = vpop.f32.mrb[0].mxu0
      %v1072 = vadd.f32 %v807, %v1071
      %v1073 = vpop.f32.mrb[0].mxu0
      %1074 = vmatprep.mubr.f32.mxu0 0.0
      %1075 = vmatmul.mubr.f32.gmra.mrb[0].mxu0 %v873
      %v1076 = vpop.f32.mrb[0].mxu0
      %v1077 = vadd.f32 %v807, %v1076
      %v1078 = vpop.f32.mrb[0].mxu0
      %1079 = vmatprep.mubr.f32.mxu0 0.0
      %1080 = vmatmul.mubr.f32.gmra.mrb[0].mxu0 %v876
      %v1081 = vpop.f32.mrb[0].mxu0
      %v1082 = vadd.f32 %v807, %v1081
      %v1083 = vpop.f32.mrb[0].mxu0
      %1084 = vmatprep.mubr.f32.mxu0 0.0
      %1085 = vmatmul.mubr.f32.gmra.mrb[0].mxu0 %v879
      %v1086 = vpop.f32.mrb[0].mxu0
      %v1087 = vadd.f32 %v807, %v1086
      %v1088 = vpop.f32.mrb[0].mxu0
      %1089 = vmatprep.mubr.f32.mxu0 0.0
      %1090 = vmatmul.mubr.f32.gmra.mrb[0].mxu0 %v882
      %v1091 = vpop.f32.mrb[0].mxu0
      %v1092 = vadd.f32 %v807, %v1091
      %v1093 = vpop.f32.mrb[0].mxu0
      %1094 = vmatprep.mubr.f32.mxu0 0.0
      %1095 = vmatmul.mubr.f32.gmra.mrb[0].mxu0 %v885
      %v1096 = vpop.f32.mrb[0].mxu0
      %v1097 = vadd.f32 %v807, %v1096
      %v1098 = vpop.f32.mrb[0].mxu0
      %1099 = vmatprep.mubr.f32.mxu0 0.0
      %1100 = vmatmul.mubr.f32.gmra.mrb[0].mxu0 %v888
      %v1101 = vpop.f32.mrb[0].mxu0
      %v1102 = vadd.f32 %v807, %v1101
      %v1103 = vpop.f32.mrb[0].mxu0
      %1104 = vmatprep.mubr.f32.mxu0 0.0
      %1105 = vmatmul.mubr.f32.gmra.mrb[0].mxu0 %v891
      %v1106 = vpop.f32.mrb[0].mxu0
      %v1107 = vadd.f32 %v807, %v1106
      %v1108 = vpop.f32.mrb[0].mxu0
      %1109 = vmatprep.mubr.f32.mxu0 0.0
      %1110 = vmatmul.mubr.f32.gmra.mrb[0].mxu0 %v894
      %v1111 = vpop.f32.mrb[0].mxu0
      %v1112 = vadd.f32 %v807, %v1111
      %v1113 = vpop.f32.mrb[0].mxu0
      %1114 = vmatprep.mubr.f32.mxu0 0.0
      %1115 = vmatmul.mubr.f32.gmra.mrb[0].mxu0 %v897
      %v1116 = vpop.f32.mrb[0].mxu0
      %v1117 = vadd.f32 %v807, %v1116
      %v1118 = vpop.f32.mrb[0].mxu0
      %1119 = vmatprep.mubr.f32.mxu0 0.0
      %1120 = vmatmul.mubr.f32.gmra.mrb[0].mxu0 %v900
      %v1121 = vpop.f32.mrb[0].mxu0
      %v1122 = vadd.f32 %v807, %v1121
      %v1123 = vpop.f32.mrb[0].mxu0
      %1124 = vmatprep.mubr.f32.mxu0 0.0
      %1125 = vmatmul.mubr.f32.gmra.mrb[0].mxu0 %v903
      %v1126 = vpop.f32.mrb[0].mxu0
      %v1127 = vadd.f32 %v807, %v1126
      %v1128 = vpop.f32.mrb[0].mxu0
      %1129 = vdwg.mxu0
      %v1130 = vmax.f32 %v972, 0.0
      %v1131 = vmax.f32 %v977, 0.0
      %v1132 = vmax.f32 %v982, 0.0
      %v1133 = vmax.f32 %v987, 0.0
      %v1134 = vmax.f32 %v992, 0.0
      %v1135 = vmax.f32 %v997, 0.0
      %v1136 = vmax.f32 %v1002, 0.0
      %v1137 = vmax.f32 %v1007, 0.0
      %v1138 = vmax.f32 %v1012, 0.0
      %v1139 = vmax.f32 %v1017, 0.0
      %v1140 = vmax.f32 %v1022, 0.0
      %v1141 = vmax.f32 %v1027, 0.0
      %v1142 = vmax.f32 %v1032, 0.0
      %v1143 = vmax.f32 %v1037, 0.0
      %v1144 = vmax.f32 %v1042, 0.0
      %v1145 = vmax.f32 %v1047, 0.0
      %v1146 = vmax.f32 %v1052, 0.0
      %v1147 = vmax.f32 %v1057, 0.0
      %v1148 = vmax.f32 %v1062, 0.0
      %v1149 = vmax.f32 %v1067, 0.0
      %v1150 = vmax.f32 %v1072, 0.0
      %v1151 = vmax.f32 %v1077, 0.0
      %v1152 = vmax.f32 %v1082, 0.0
      %v1153 = vmax.f32 %v1087, 0.0
      %v1154 = vmax.f32 %v1092, 0.0
      %v1155 = vmax.f32 %v1097, 0.0
      %v1156 = vmax.f32 %v1102, 0.0
      %v1157 = vmax.f32 %v1107, 0.0
      %v1158 = vmax.f32 %v1112, 0.0
      %v1159 = vmax.f32 %v1117, 0.0
      %v1160 = vmax.f32 %v1122, 0.0
      %v1161 = vmax.f32 %v1127, 0.0
      %v1162 = vld [vmem:[%s3] sm:$0xff]
      %v1163 = vld [vmem:[%s3 + $0x8] sm:$0xff]
      %v1164 = vld [vmem:[%s3 + $0x10] sm:$0xff]
      %v1165 = vld [vmem:[%s3 + $0x18] sm:$0xff]
      %v1166 = vld [vmem:[%s4] sm:$0x1]
      %v1168 = vlaneseq
      %v1169 = vshrl.u32 %v1168, 7
      %v1170 = vsub.s32 0, %v1169
      %v1171 = vrot.slane %v1166, %v1170
      %v1174 = vsel %vm381, %v1130, 0
      %v1177 = vsel %vm381, %v1131, 0
      %v1180 = vsel %vm381, %v1132, 0
      %v1183 = vsel %vm381, %v1133, 0
      %v1186 = vsel %vm381, %v1134, 0
      %v1189 = vsel %vm381, %v1135, 0
      %v1192 = vsel %vm381, %v1136, 0
      %v1195 = vsel %vm381, %v1137, 0
      %v1198 = vsel %vm381, %v1138, 0
      %v1201 = vsel %vm381, %v1139, 0
      %v1204 = vsel %vm381, %v1140, 0
      %v1207 = vsel %vm381, %v1141, 0
      %v1210 = vsel %vm381, %v1142, 0
      %v1213 = vsel %vm381, %v1143, 0
      %v1216 = vsel %vm381, %v1144, 0
      %v1219 = vsel %vm381, %v1145, 0
      %v1222 = vsel %vm381, %v1146, 0
      %v1225 = vsel %vm381, %v1147, 0
      %v1228 = vsel %vm381, %v1148, 0
      %v1231 = vsel %vm381, %v1149, 0
      %v1234 = vsel %vm381, %v1150, 0
      %v1237 = vsel %vm381, %v1151, 0
      %v1240 = vsel %vm381, %v1152, 0
      %v1243 = vsel %vm381, %v1153, 0
      %v1246 = vsel %vm381, %v1154, 0
      %v1249 = vsel %vm381, %v1155, 0
      %v1252 = vsel %vm381, %v1156, 0
      %v1255 = vsel %vm381, %v1157, 0
      %v1258 = vsel %vm381, %v1158, 0
      %v1261 = vsel %vm381, %v1159, 0
      %v1264 = vsel %vm381, %v1160, 0
      %v1267 = vsel %vm381, %v1161, 0
      %1269 = vmatprep.subr.mxu0 0.0
      %1270 = vmatpush1.msra.mxu0 %v1162
      %1271 = vmatprep.subr.mxu0 0.0
      %1272 = vmatpush1.msra.mxu0 %v1163
      %1273 = vmatprep.subr.mxu0 0.0
      %1274 = vmatpush1.msra.mxu0 %v1164
      %1275 = vmatprep.subr.mxu0 0.0
      %1276 = vmatpush1.msra.mxu0 %v1165
      %1277 = vmatprep.subr.mxu0 0.0
      %1278 = vmatpush1.msra.mxu0 0.0
      %1279 = vmatprep.subr.mxu0 0.0
      %1280 = vmatpush1.msra.mxu0 0.0
      %1281 = vmatprep.subr.mxu0 0.0
      %1282 = vmatpush1.msra.mxu0 0.0
      %1283 = vmatprep.subr.mxu0 0.0
      %1284 = vmatpush1.msra.mxu0 0.0
      %1285 = vmatprep.subr.mxu0 0.0
      %1286 = vmatpush1.msra.mxu0 0.0
      %1287 = vmatprep.subr.mxu0 0.0
      %1288 = vmatpush1.msra.mxu0 0.0
      %1289 = vmatprep.subr.mxu0 0.0
      %1290 = vmatpush1.msra.mxu0 0.0
      %1291 = vmatprep.subr.mxu0 0.0
      %1292 = vmatpush1.msra.mxu0 0.0
      %1293 = vmatprep.subr.mxu0 0.0
      %1294 = vmatpush1.msra.mxu0 0.0
      %1295 = vmatprep.subr.mxu0 0.0
      %1296 = vmatpush1.msra.mxu0 0.0
      %1297 = vmatprep.subr.mxu0 0.0
      %1298 = vmatpush1.msra.mxu0 0.0
      %1299 = vmatprep.subr.mxu0 0.0
      %1300 = vmatpush1.msra.mxu0 0.0
      %1301 = vmatprep.subr.mxu0 0.0
      %1302 = vmatpush1.msra.mxu0 0.0
      %1303 = vmatprep.subr.mxu0 0.0
      %1304 = vmatpush1.msra.mxu0 0.0
      %1305 = vmatprep.subr.mxu0 0.0
      %1306 = vmatpush1.msra.mxu0 0.0
      %1307 = vmatprep.subr.mxu0 0.0
      %1308 = vmatpush1.msra.mxu0 0.0
      %1309 = vmatprep.subr.mxu0 0.0
      %1310 = vmatpush1.msra.mxu0 0.0
      %1311 = vmatprep.subr.mxu0 0.0
      %1312 = vmatpush1.msra.mxu0 0.0
      %1313 = vmatprep.subr.mxu0 0.0
      %1314 = vmatpush1.msra.mxu0 0.0
      %1315 = vmatprep.subr.mxu0 0.0
      %1316 = vmatpush1.msra.mxu0 0.0
      %1317 = vmatprep.subr.mxu0 0.0
      %1318 = vmatpush1.msra.mxu0 0.0
      %1319 = vmatprep.subr.mxu0 0.0
      %1320 = vmatpush1.msra.mxu0 0.0
      %1321 = vmatprep.subr.mxu0 0.0
      %1322 = vmatpush1.msra.mxu0 0.0
      %1323 = vmatprep.subr.mxu0 0.0
      %1324 = vmatpush1.msra.mxu0 0.0
      %1325 = vmatprep.subr.mxu0 0.0
      %1326 = vmatpush1.msra.mxu0 0.0
      %1327 = vmatprep.subr.mxu0 0.0
      %1328 = vmatpush1.msra.mxu0 0.0
      %1329 = vmatprep.subr.mxu0 0.0
      %1330 = vmatpush1.msra.mxu0 0.0
      %1331 = vmatprep.subr.mxu0 0.0
      %1332 = vmatpush1.msra.mxu0 0.0
      %1333 = vmatprep.mubr.f32.mxu0 0.0
      %1334 = vmatmul.mubr.f32.gmra.mrb[0].mxu0 %v1174
      %v1335 = vpop.f32.mrb[0].mxu0
      %v1336 = vadd.f32 %v1171, %v1335
      %v1337 = vpop.f32.mrb[0].mxu0
      %1338 = vmatprep.mubr.f32.mxu0 0.0
      %1339 = vmatmul.mubr.f32.gmra.mrb[0].mxu0 %v1177
      %v1340 = vpop.f32.mrb[0].mxu0
      %v1341 = vadd.f32 %v1171, %v1340
      %v1342 = vpop.f32.mrb[0].mxu0
      %1343 = vmatprep.mubr.f32.mxu0 0.0
      %1344 = vmatmul.mubr.f32.gmra.mrb[0].mxu0 %v1180
      %v1345 = vpop.f32.mrb[0].mxu0
      %v1346 = vadd.f32 %v1171, %v1345
      %v1347 = vpop.f32.mrb[0].mxu0
      %1348 = vmatprep.mubr.f32.mxu0 0.0
      %1349 = vmatmul.mubr.f32.gmra.mrb[0].mxu0 %v1183
      %v1350 = vpop.f32.mrb[0].mxu0
      %v1351 = vadd.f32 %v1171, %v1350
      %v1352 = vpop.f32.mrb[0].mxu0
      %1353 = vmatprep.mubr.f32.mxu0 0.0
      %1354 = vmatmul.mubr.f32.gmra.mrb[0].mxu0 %v1186
      %v1355 = vpop.f32.mrb[0].mxu0
      %v1356 = vadd.f32 %v1171, %v1355
      %v1357 = vpop.f32.mrb[0].mxu0
      %1358 = vmatprep.mubr.f32.mxu0 0.0
      %1359 = vmatmul.mubr.f32.gmra.mrb[0].mxu0 %v1189
      %v1360 = vpop.f32.mrb[0].mxu0
      %v1361 = vadd.f32 %v1171, %v1360
      %v1362 = vpop.f32.mrb[0].mxu0
      %1363 = vmatprep.mubr.f32.mxu0 0.0
      %1364 = vmatmul.mubr.f32.gmra.mrb[0].mxu0 %v1192
      %v1365 = vpop.f32.mrb[0].mxu0
      %v1366 = vadd.f32 %v1171, %v1365
      %v1367 = vpop.f32.mrb[0].mxu0
      %1368 = vmatprep.mubr.f32.mxu0 0.0
      %1369 = vmatmul.mubr.f32.gmra.mrb[0].mxu0 %v1195
      %v1370 = vpop.f32.mrb[0].mxu0
      %v1371 = vadd.f32 %v1171, %v1370
      %v1372 = vpop.f32.mrb[0].mxu0
      %1373 = vmatprep.mubr.f32.mxu0 0.0
      %1374 = vmatmul.mubr.f32.gmra.mrb[0].mxu0 %v1198
      %v1375 = vpop.f32.mrb[0].mxu0
      %v1376 = vadd.f32 %v1171, %v1375
      %v1377 = vpop.f32.mrb[0].mxu0
      %1378 = vmatprep.mubr.f32.mxu0 0.0
      %1379 = vmatmul.mubr.f32.gmra.mrb[0].mxu0 %v1201
      %v1380 = vpop.f32.mrb[0].mxu0
      %v1381 = vadd.f32 %v1171, %v1380
      %v1382 = vpop.f32.mrb[0].mxu0
      %1383 = vmatprep.mubr.f32.mxu0 0.0
      %1384 = vmatmul.mubr.f32.gmra.mrb[0].mxu0 %v1204
      %v1385 = vpop.f32.mrb[0].mxu0
      %v1386 = vadd.f32 %v1171, %v1385
      %v1387 = vpop.f32.mrb[0].mxu0
      %1388 = vmatprep.mubr.f32.mxu0 0.0
      %1389 = vmatmul.mubr.f32.gmra.mrb[0].mxu0 %v1207
      %v1390 = vpop.f32.mrb[0].mxu0
      %v1391 = vadd.f32 %v1171, %v1390
      %v1392 = vpop.f32.mrb[0].mxu0
      %1393 = vmatprep.mubr.f32.mxu0 0.0
      %1394 = vmatmul.mubr.f32.gmra.mrb[0].mxu0 %v1210
      %v1395 = vpop.f32.mrb[0].mxu0
      %v1396 = vadd.f32 %v1171, %v1395
      %v1397 = vpop.f32.mrb[0].mxu0
      %1398 = vmatprep.mubr.f32.mxu0 0.0
      %1399 = vmatmul.mubr.f32.gmra.mrb[0].mxu0 %v1213
      %v1400 = vpop.f32.mrb[0].mxu0
      %v1401 = vadd.f32 %v1171, %v1400
      %v1402 = vpop.f32.mrb[0].mxu0
      %1403 = vmatprep.mubr.f32.mxu0 0.0
      %1404 = vmatmul.mubr.f32.gmra.mrb[0].mxu0 %v1216
      %v1405 = vpop.f32.mrb[0].mxu0
      %v1406 = vadd.f32 %v1171, %v1405
      %v1407 = vpop.f32.mrb[0].mxu0
      %1408 = vmatprep.mubr.f32.mxu0 0.0
      %1409 = vmatmul.mubr.f32.gmra.mrb[0].mxu0 %v1219
      %v1410 = vpop.f32.mrb[0].mxu0
      %v1411 = vadd.f32 %v1171, %v1410
      %v1412 = vpop.f32.mrb[0].mxu0
      %1413 = vmatprep.mubr.f32.mxu0 0.0
      %1414 = vmatmul.mubr.f32.gmra.mrb[0].mxu0 %v1222
      %v1415 = vpop.f32.mrb[0].mxu0
      %v1416 = vadd.f32 %v1171, %v1415
      %v1417 = vpop.f32.mrb[0].mxu0
      %1418 = vmatprep.mubr.f32.mxu0 0.0
      %1419 = vmatmul.mubr.f32.gmra.mrb[0].mxu0 %v1225
      %v1420 = vpop.f32.mrb[0].mxu0
      %v1421 = vadd.f32 %v1171, %v1420
      %v1422 = vpop.f32.mrb[0].mxu0
      %1423 = vmatprep.mubr.f32.mxu0 0.0
      %1424 = vmatmul.mubr.f32.gmra.mrb[0].mxu0 %v1228
      %v1425 = vpop.f32.mrb[0].mxu0
      %v1426 = vadd.f32 %v1171, %v1425
      %v1427 = vpop.f32.mrb[0].mxu0
      %1428 = vmatprep.mubr.f32.mxu0 0.0
      %1429 = vmatmul.mubr.f32.gmra.mrb[0].mxu0 %v1231
      %v1430 = vpop.f32.mrb[0].mxu0
      %v1431 = vadd.f32 %v1171, %v1430
      %v1432 = vpop.f32.mrb[0].mxu0
      %1433 = vmatprep.mubr.f32.mxu0 0.0
      %1434 = vmatmul.mubr.f32.gmra.mrb[0].mxu0 %v1234
      %v1435 = vpop.f32.mrb[0].mxu0
      %v1436 = vadd.f32 %v1171, %v1435
      %v1437 = vpop.f32.mrb[0].mxu0
      %1438 = vmatprep.mubr.f32.mxu0 0.0
      %1439 = vmatmul.mubr.f32.gmra.mrb[0].mxu0 %v1237
      %v1440 = vpop.f32.mrb[0].mxu0
      %v1441 = vadd.f32 %v1171, %v1440
      %v1442 = vpop.f32.mrb[0].mxu0
      %1443 = vmatprep.mubr.f32.mxu0 0.0
      %1444 = vmatmul.mubr.f32.gmra.mrb[0].mxu0 %v1240
      %v1445 = vpop.f32.mrb[0].mxu0
      %v1446 = vadd.f32 %v1171, %v1445
      %v1447 = vpop.f32.mrb[0].mxu0
      %1448 = vmatprep.mubr.f32.mxu0 0.0
      %1449 = vmatmul.mubr.f32.gmra.mrb[0].mxu0 %v1243
      %v1450 = vpop.f32.mrb[0].mxu0
      %v1451 = vadd.f32 %v1171, %v1450
      %v1452 = vpop.f32.mrb[0].mxu0
      %1453 = vmatprep.mubr.f32.mxu0 0.0
      %1454 = vmatmul.mubr.f32.gmra.mrb[0].mxu0 %v1246
      %v1455 = vpop.f32.mrb[0].mxu0
      %v1456 = vadd.f32 %v1171, %v1455
      %v1457 = vpop.f32.mrb[0].mxu0
      %1458 = vmatprep.mubr.f32.mxu0 0.0
      %1459 = vmatmul.mubr.f32.gmra.mrb[0].mxu0 %v1249
      %v1460 = vpop.f32.mrb[0].mxu0
      %v1461 = vadd.f32 %v1171, %v1460
      %v1462 = vpop.f32.mrb[0].mxu0
      %1463 = vmatprep.mubr.f32.mxu0 0.0
      %1464 = vmatmul.mubr.f32.gmra.mrb[0].mxu0 %v1252
      %v1465 = vpop.f32.mrb[0].mxu0
      %v1466 = vadd.f32 %v1171, %v1465
      %v1467 = vpop.f32.mrb[0].mxu0
      %1468 = vmatprep.mubr.f32.mxu0 0.0
      %1469 = vmatmul.mubr.f32.gmra.mrb[0].mxu0 %v1255
      %v1470 = vpop.f32.mrb[0].mxu0
      %v1471 = vadd.f32 %v1171, %v1470
      %v1472 = vpop.f32.mrb[0].mxu0
      %1473 = vmatprep.mubr.f32.mxu0 0.0
      %1474 = vmatmul.mubr.f32.gmra.mrb[0].mxu0 %v1258
      %v1475 = vpop.f32.mrb[0].mxu0
      %v1476 = vadd.f32 %v1171, %v1475
      %v1477 = vpop.f32.mrb[0].mxu0
      %1478 = vmatprep.mubr.f32.mxu0 0.0
      %1479 = vmatmul.mubr.f32.gmra.mrb[0].mxu0 %v1261
      %v1480 = vpop.f32.mrb[0].mxu0
      %v1481 = vadd.f32 %v1171, %v1480
      %v1482 = vpop.f32.mrb[0].mxu0
      %1483 = vmatprep.mubr.f32.mxu0 0.0
      %1484 = vmatmul.mubr.f32.gmra.mrb[0].mxu0 %v1264
      %v1485 = vpop.f32.mrb[0].mxu0
      %v1486 = vadd.f32 %v1171, %v1485
      %v1487 = vpop.f32.mrb[0].mxu0
      %1488 = vmatprep.mubr.f32.mxu0 0.0
      %1489 = vmatmul.mubr.f32.gmra.mrb[0].mxu0 %v1267
      %v1490 = vpop.f32.mrb[0].mxu0
      %v1491 = vadd.f32 %v1171, %v1490
      %v1492 = vpop.f32.mrb[0].mxu0
      %1493 = vdwg.mxu0
      %v1494 = vmax.f32 %v1336, 0.0
      %v1495 = vmax.f32 %v1341, 0.0
      %v1496 = vmax.f32 %v1346, 0.0
      %v1497 = vmax.f32 %v1351, 0.0
      %v1498 = vmax.f32 %v1356, 0.0
      %v1499 = vmax.f32 %v1361, 0.0
      %v1500 = vmax.f32 %v1366, 0.0
      %v1501 = vmax.f32 %v1371, 0.0
      %v1502 = vmax.f32 %v1376, 0.0
      %v1503 = vmax.f32 %v1381, 0.0
      %v1504 = vmax.f32 %v1386, 0.0
      %v1505 = vmax.f32 %v1391, 0.0
      %v1506 = vmax.f32 %v1396, 0.0
      %v1507 = vmax.f32 %v1401, 0.0
      %v1508 = vmax.f32 %v1406, 0.0
      %v1509 = vmax.f32 %v1411, 0.0
      %v1510 = vmax.f32 %v1416, 0.0
      %v1511 = vmax.f32 %v1421, 0.0
      %v1512 = vmax.f32 %v1426, 0.0
      %v1513 = vmax.f32 %v1431, 0.0
      %v1514 = vmax.f32 %v1436, 0.0
      %v1515 = vmax.f32 %v1441, 0.0
      %v1516 = vmax.f32 %v1446, 0.0
      %v1517 = vmax.f32 %v1451, 0.0
      %v1518 = vmax.f32 %v1456, 0.0
      %v1519 = vmax.f32 %v1461, 0.0
      %v1520 = vmax.f32 %v1466, 0.0
      %v1521 = vmax.f32 %v1471, 0.0
      %v1522 = vmax.f32 %v1476, 0.0
      %v1523 = vmax.f32 %v1481, 0.0
      %v1524 = vmax.f32 %v1486, 0.0
      %v1525 = vmax.f32 %v1491, 0.0
      %v1526 = vld [vmem:[%s5] sm:$0xff]
      %v1527 = vld [vmem:[%s5 + $0x8] sm:$0xff]
      %v1528 = vld [vmem:[%s5 + $0x10] sm:$0xff]
      %v1529 = vld [vmem:[%s5 + $0x18] sm:$0xff]
      %v1530 = vld [vmem:[%s6] sm:$0x1]
      %v1532 = vlaneseq
      %v1533 = vshrl.u32 %v1532, 7
      %v1534 = vsub.s32 0, %v1533
      %v1535 = vrot.slane %v1530, %v1534
      %v1538 = vsel %vm381, %v1494, 0
      %v1541 = vsel %vm381, %v1495, 0
      %v1544 = vsel %vm381, %v1496, 0
      %v1547 = vsel %vm381, %v1497, 0
      %v1550 = vsel %vm381, %v1498, 0
      %v1553 = vsel %vm381, %v1499, 0
      %v1556 = vsel %vm381, %v1500, 0
      %v1559 = vsel %vm381, %v1501, 0
      %v1562 = vsel %vm381, %v1502, 0
      %v1565 = vsel %vm381, %v1503, 0
      %v1568 = vsel %vm381, %v1504, 0
      %v1571 = vsel %vm381, %v1505, 0
      %v1574 = vsel %vm381, %v1506, 0
      %v1577 = vsel %vm381, %v1507, 0
      %v1580 = vsel %vm381, %v1508, 0
      %v1583 = vsel %vm381, %v1509, 0
      %v1586 = vsel %vm381, %v1510, 0
      %v1589 = vsel %vm381, %v1511, 0
      %v1592 = vsel %vm381, %v1512, 0
      %v1595 = vsel %vm381, %v1513, 0
      %v1598 = vsel %vm381, %v1514, 0
      %v1601 = vsel %vm381, %v1515, 0
      %v1604 = vsel %vm381, %v1516, 0
      %v1607 = vsel %vm381, %v1517, 0
      %v1610 = vsel %vm381, %v1518, 0
      %v1613 = vsel %vm381, %v1519, 0
      %v1616 = vsel %vm381, %v1520, 0
      %v1619 = vsel %vm381, %v1521, 0
      %v1622 = vsel %vm381, %v1522, 0
      %v1625 = vsel %vm381, %v1523, 0
      %v1628 = vsel %vm381, %v1524, 0
      %v1631 = vsel %vm381, %v1525, 0
      %1633 = vmatprep.subr.mxu0 0.0
      %1634 = vmatpush1.msra.mxu0 %v1526
      %1635 = vmatprep.subr.mxu0 0.0
      %1636 = vmatpush1.msra.mxu0 %v1527
      %1637 = vmatprep.subr.mxu0 0.0
      %1638 = vmatpush1.msra.mxu0 %v1528
      %1639 = vmatprep.subr.mxu0 0.0
      %1640 = vmatpush1.msra.mxu0 %v1529
      %1641 = vmatprep.subr.mxu0 0.0
      %1642 = vmatpush1.msra.mxu0 0.0
      %1643 = vmatprep.subr.mxu0 0.0
      %1644 = vmatpush1.msra.mxu0 0.0
      %1645 = vmatprep.subr.mxu0 0.0
      %1646 = vmatpush1.msra.mxu0 0.0
      %1647 = vmatprep.subr.mxu0 0.0
      %1648 = vmatpush1.msra.mxu0 0.0
      %1649 = vmatprep.subr.mxu0 0.0
      %1650 = vmatpush1.msra.mxu0 0.0
      %1651 = vmatprep.subr.mxu0 0.0
      %1652 = vmatpush1.msra.mxu0 0.0
      %1653 = vmatprep.subr.mxu0 0.0
      %1654 = vmatpush1.msra.mxu0 0.0
      %1655 = vmatprep.subr.mxu0 0.0
      %1656 = vmatpush1.msra.mxu0 0.0
      %1657 = vmatprep.subr.mxu0 0.0
      %1658 = vmatpush1.msra.mxu0 0.0
      %1659 = vmatprep.subr.mxu0 0.0
      %1660 = vmatpush1.msra.mxu0 0.0
      %1661 = vmatprep.subr.mxu0 0.0
      %1662 = vmatpush1.msra.mxu0 0.0
      %1663 = vmatprep.subr.mxu0 0.0
      %1664 = vmatpush1.msra.mxu0 0.0
      %1665 = vmatprep.subr.mxu0 0.0
      %1666 = vmatpush1.msra.mxu0 0.0
      %1667 = vmatprep.subr.mxu0 0.0
      %1668 = vmatpush1.msra.mxu0 0.0
      %1669 = vmatprep.subr.mxu0 0.0
      %1670 = vmatpush1.msra.mxu0 0.0
      %1671 = vmatprep.subr.mxu0 0.0
      %1672 = vmatpush1.msra.mxu0 0.0
      %1673 = vmatprep.subr.mxu0 0.0
      %1674 = vmatpush1.msra.mxu0 0.0
      %1675 = vmatprep.subr.mxu0 0.0
      %1676 = vmatpush1.msra.mxu0 0.0
      %1677 = vmatprep.subr.mxu0 0.0
      %1678 = vmatpush1.msra.mxu0 0.0
      %1679 = vmatprep.subr.mxu0 0.0
      %1680 = vmatpush1.msra.mxu0 0.0
      %1681 = vmatprep.subr.mxu0 0.0
      %1682 = vmatpush1.msra.mxu0 0.0
      %1683 = vmatprep.subr.mxu0 0.0
      %1684 = vmatpush1.msra.mxu0 0.0
      %1685 = vmatprep.subr.mxu0 0.0
      %1686 = vmatpush1.msra.mxu0 0.0
      %1687 = vmatprep.subr.mxu0 0.0
      %1688 = vmatpush1.msra.mxu0 0.0
      %1689 = vmatprep.subr.mxu0 0.0
      %1690 = vmatpush1.msra.mxu0 0.0
      %1691 = vmatprep.subr.mxu0 0.0
      %1692 = vmatpush1.msra.mxu0 0.0
      %1693 = vmatprep.subr.mxu0 0.0
      %1694 = vmatpush1.msra.mxu0 0.0
      %1695 = vmatprep.subr.mxu0 0.0
      %1696 = vmatpush1.msra.mxu0 0.0
      %1697 = vmatprep.mubr.f32.mxu0 0.0
      %1698 = vmatmul.mubr.f32.gmra.mrb[0].mxu0 %v1538
      %v1699 = vpop.f32.mrb[0].mxu0
      %v1700 = vadd.f32 %v1535, %v1699
      %v1701 = vpop.f32.mrb[0].mxu0
      %1702 = vmatprep.mubr.f32.mxu0 0.0
      %1703 = vmatmul.mubr.f32.gmra.mrb[0].mxu0 %v1541
      %v1704 = vpop.f32.mrb[0].mxu0
      %v1705 = vadd.f32 %v1535, %v1704
      %v1706 = vpop.f32.mrb[0].mxu0
      %1707 = vmatprep.mubr.f32.mxu0 0.0
      %1708 = vmatmul.mubr.f32.gmra.mrb[0].mxu0 %v1544
      %v1709 = vpop.f32.mrb[0].mxu0
      %v1710 = vadd.f32 %v1535, %v1709
      %v1711 = vpop.f32.mrb[0].mxu0
      %1712 = vmatprep.mubr.f32.mxu0 0.0
      %1713 = vmatmul.mubr.f32.gmra.mrb[0].mxu0 %v1547
      %v1714 = vpop.f32.mrb[0].mxu0
      %v1715 = vadd.f32 %v1535, %v1714
      %v1716 = vpop.f32.mrb[0].mxu0
      %1717 = vmatprep.mubr.f32.mxu0 0.0
      %1718 = vmatmul.mubr.f32.gmra.mrb[0].mxu0 %v1550
      %v1719 = vpop.f32.mrb[0].mxu0
      %v1720 = vadd.f32 %v1535, %v1719
      %v1721 = vpop.f32.mrb[0].mxu0
      %1722 = vmatprep.mubr.f32.mxu0 0.0
      %1723 = vmatmul.mubr.f32.gmra.mrb[0].mxu0 %v1553
      %v1724 = vpop.f32.mrb[0].mxu0
      %v1725 = vadd.f32 %v1535, %v1724
      %v1726 = vpop.f32.mrb[0].mxu0
      %1727 = vmatprep.mubr.f32.mxu0 0.0
      %1728 = vmatmul.mubr.f32.gmra.mrb[0].mxu0 %v1556
      %v1729 = vpop.f32.mrb[0].mxu0
      %v1730 = vadd.f32 %v1535, %v1729
      %v1731 = vpop.f32.mrb[0].mxu0
      %1732 = vmatprep.mubr.f32.mxu0 0.0
      %1733 = vmatmul.mubr.f32.gmra.mrb[0].mxu0 %v1559
      %v1734 = vpop.f32.mrb[0].mxu0
      %v1735 = vadd.f32 %v1535, %v1734
      %v1736 = vpop.f32.mrb[0].mxu0
      %1737 = vmatprep.mubr.f32.mxu0 0.0
      %1738 = vmatmul.mubr.f32.gmra.mrb[0].mxu0 %v1562
      %v1739 = vpop.f32.mrb[0].mxu0
      %v1740 = vadd.f32 %v1535, %v1739
      %v1741 = vpop.f32.mrb[0].mxu0
      %1742 = vmatprep.mubr.f32.mxu0 0.0
      %1743 = vmatmul.mubr.f32.gmra.mrb[0].mxu0 %v1565
      %v1744 = vpop.f32.mrb[0].mxu0
      %v1745 = vadd.f32 %v1535, %v1744
      %v1746 = vpop.f32.mrb[0].mxu0
      %1747 = vmatprep.mubr.f32.mxu0 0.0
      %1748 = vmatmul.mubr.f32.gmra.mrb[0].mxu0 %v1568
      %v1749 = vpop.f32.mrb[0].mxu0
      %v1750 = vadd.f32 %v1535, %v1749
      %v1751 = vpop.f32.mrb[0].mxu0
      %1752 = vmatprep.mubr.f32.mxu0 0.0
      %1753 = vmatmul.mubr.f32.gmra.mrb[0].mxu0 %v1571
      %v1754 = vpop.f32.mrb[0].mxu0
      %v1755 = vadd.f32 %v1535, %v1754
      %v1756 = vpop.f32.mrb[0].mxu0
      %1757 = vmatprep.mubr.f32.mxu0 0.0
      %1758 = vmatmul.mubr.f32.gmra.mrb[0].mxu0 %v1574
      %v1759 = vpop.f32.mrb[0].mxu0
      %v1760 = vadd.f32 %v1535, %v1759
      %v1761 = vpop.f32.mrb[0].mxu0
      %1762 = vmatprep.mubr.f32.mxu0 0.0
      %1763 = vmatmul.mubr.f32.gmra.mrb[0].mxu0 %v1577
      %v1764 = vpop.f32.mrb[0].mxu0
      %v1765 = vadd.f32 %v1535, %v1764
      %v1766 = vpop.f32.mrb[0].mxu0
      %1767 = vmatprep.mubr.f32.mxu0 0.0
      %1768 = vmatmul.mubr.f32.gmra.mrb[0].mxu0 %v1580
      %v1769 = vpop.f32.mrb[0].mxu0
      %v1770 = vadd.f32 %v1535, %v1769
      %v1771 = vpop.f32.mrb[0].mxu0
      %1772 = vmatprep.mubr.f32.mxu0 0.0
      %1773 = vmatmul.mubr.f32.gmra.mrb[0].mxu0 %v1583
      %v1774 = vpop.f32.mrb[0].mxu0
      %v1775 = vadd.f32 %v1535, %v1774
      %v1776 = vpop.f32.mrb[0].mxu0
      %1777 = vmatprep.mubr.f32.mxu0 0.0
      %1778 = vmatmul.mubr.f32.gmra.mrb[0].mxu0 %v1586
      %v1779 = vpop.f32.mrb[0].mxu0
      %v1780 = vadd.f32 %v1535, %v1779
      %v1781 = vpop.f32.mrb[0].mxu0
      %1782 = vmatprep.mubr.f32.mxu0 0.0
      %1783 = vmatmul.mubr.f32.gmra.mrb[0].mxu0 %v1589
      %v1784 = vpop.f32.mrb[0].mxu0
      %v1785 = vadd.f32 %v1535, %v1784
      %v1786 = vpop.f32.mrb[0].mxu0
      %1787 = vmatprep.mubr.f32.mxu0 0.0
      %1788 = vmatmul.mubr.f32.gmra.mrb[0].mxu0 %v1592
      %v1789 = vpop.f32.mrb[0].mxu0
      %v1790 = vadd.f32 %v1535, %v1789
      %v1791 = vpop.f32.mrb[0].mxu0
      %1792 = vmatprep.mubr.f32.mxu0 0.0
      %1793 = vmatmul.mubr.f32.gmra.mrb[0].mxu0 %v1595
      %v1794 = vpop.f32.mrb[0].mxu0
      %v1795 = vadd.f32 %v1535, %v1794
      %v1796 = vpop.f32.mrb[0].mxu0
      %1797 = vmatprep.mubr.f32.mxu0 0.0
      %1798 = vmatmul.mubr.f32.gmra.mrb[0].mxu0 %v1598
      %v1799 = vpop.f32.mrb[0].mxu0
      %v1800 = vadd.f32 %v1535, %v1799
      %v1801 = vpop.f32.mrb[0].mxu0
      %1802 = vmatprep.mubr.f32.mxu0 0.0
      %1803 = vmatmul.mubr.f32.gmra.mrb[0].mxu0 %v1601
      %v1804 = vpop.f32.mrb[0].mxu0
      %v1805 = vadd.f32 %v1535, %v1804
      %v1806 = vpop.f32.mrb[0].mxu0
      %1807 = vmatprep.mubr.f32.mxu0 0.0
      %1808 = vmatmul.mubr.f32.gmra.mrb[0].mxu0 %v1604
      %v1809 = vpop.f32.mrb[0].mxu0
      %v1810 = vadd.f32 %v1535, %v1809
      %v1811 = vpop.f32.mrb[0].mxu0
      %1812 = vmatprep.mubr.f32.mxu0 0.0
      %1813 = vmatmul.mubr.f32.gmra.mrb[0].mxu0 %v1607
      %v1814 = vpop.f32.mrb[0].mxu0
      %v1815 = vadd.f32 %v1535, %v1814
      %v1816 = vpop.f32.mrb[0].mxu0
      %1817 = vmatprep.mubr.f32.mxu0 0.0
      %1818 = vmatmul.mubr.f32.gmra.mrb[0].mxu0 %v1610
      %v1819 = vpop.f32.mrb[0].mxu0
      %v1820 = vadd.f32 %v1535, %v1819
      %v1821 = vpop.f32.mrb[0].mxu0
      %1822 = vmatprep.mubr.f32.mxu0 0.0
      %1823 = vmatmul.mubr.f32.gmra.mrb[0].mxu0 %v1613
      %v1824 = vpop.f32.mrb[0].mxu0
      %v1825 = vadd.f32 %v1535, %v1824
      %v1826 = vpop.f32.mrb[0].mxu0
      %1827 = vmatprep.mubr.f32.mxu0 0.0
      %1828 = vmatmul.mubr.f32.gmra.mrb[0].mxu0 %v1616
      %v1829 = vpop.f32.mrb[0].mxu0
      %v1830 = vadd.f32 %v1535, %v1829
      %v1831 = vpop.f32.mrb[0].mxu0
      %1832 = vmatprep.mubr.f32.mxu0 0.0
      %1833 = vmatmul.mubr.f32.gmra.mrb[0].mxu0 %v1619
      %v1834 = vpop.f32.mrb[0].mxu0
      %v1835 = vadd.f32 %v1535, %v1834
      %v1836 = vpop.f32.mrb[0].mxu0
      %1837 = vmatprep.mubr.f32.mxu0 0.0
      %1838 = vmatmul.mubr.f32.gmra.mrb[0].mxu0 %v1622
      %v1839 = vpop.f32.mrb[0].mxu0
      %v1840 = vadd.f32 %v1535, %v1839
      %v1841 = vpop.f32.mrb[0].mxu0
      %1842 = vmatprep.mubr.f32.mxu0 0.0
      %1843 = vmatmul.mubr.f32.gmra.mrb[0].mxu0 %v1625
      %v1844 = vpop.f32.mrb[0].mxu0
      %v1845 = vadd.f32 %v1535, %v1844
      %v1846 = vpop.f32.mrb[0].mxu0
      %1847 = vmatprep.mubr.f32.mxu0 0.0
      %1848 = vmatmul.mubr.f32.gmra.mrb[0].mxu0 %v1628
      %v1849 = vpop.f32.mrb[0].mxu0
      %v1850 = vadd.f32 %v1535, %v1849
      %v1851 = vpop.f32.mrb[0].mxu0
      %1852 = vmatprep.mubr.f32.mxu0 0.0
      %1853 = vmatmul.mubr.f32.gmra.mrb[0].mxu0 %v1631
      %v1854 = vpop.f32.mrb[0].mxu0
      %v1855 = vadd.f32 %v1535, %v1854
      %v1856 = vpop.f32.mrb[0].mxu0
      %1857 = vdwg.mxu0
      %1858 = vst [vmem:[%s280] sm:$0xff] %v1700
      %1859 = vst [vmem:[%s280 + $0x8] sm:$0xff] %v1705
      %1860 = vst [vmem:[%s280 + $0x10] sm:$0xff] %v1710
      %1861 = vst [vmem:[%s280 + $0x18] sm:$0xff] %v1715
      %1862 = vst [vmem:[%s280 + $0x20] sm:$0xff] %v1720
      %1863 = vst [vmem:[%s280 + $0x28] sm:$0xff] %v1725
      %1864 = vst [vmem:[%s280 + $0x30] sm:$0xff] %v1730
      %1865 = vst [vmem:[%s280 + $0x38] sm:$0xff] %v1735
      %1866 = vst [vmem:[%s280 + $0x40] sm:$0xff] %v1740
      %1867 = vst [vmem:[%s280 + $0x48] sm:$0xff] %v1745
      %1868 = vst [vmem:[%s280 + $0x50] sm:$0xff] %v1750
      %1869 = vst [vmem:[%s280 + $0x58] sm:$0xff] %v1755
      %1870 = vst [vmem:[%s280 + $0x60] sm:$0xff] %v1760
      %1871 = vst [vmem:[%s280 + $0x68] sm:$0xff] %v1765
      %1872 = vst [vmem:[%s280 + $0x70] sm:$0xff] %v1770
      %1873 = vst [vmem:[%s280 + $0x78] sm:$0xff] %v1775
      %1874 = vst [vmem:[%s280 + $0x80] sm:$0xff] %v1780
      %1875 = vst [vmem:[%s280 + $0x88] sm:$0xff] %v1785
      %1876 = vst [vmem:[%s280 + $0x90] sm:$0xff] %v1790
      %1877 = vst [vmem:[%s280 + $0x98] sm:$0xff] %v1795
      %1878 = vst [vmem:[%s280 + $0xa0] sm:$0xff] %v1800
      %1879 = vst [vmem:[%s280 + $0xa8] sm:$0xff] %v1805
      %1880 = vst [vmem:[%s280 + $0xb0] sm:$0xff] %v1810
      %1881 = vst [vmem:[%s280 + $0xb8] sm:$0xff] %v1815
      %1882 = vst [vmem:[%s280 + $0xc0] sm:$0xff] %v1820
      %1883 = vst [vmem:[%s280 + $0xc8] sm:$0xff] %v1825
      %1884 = vst [vmem:[%s280 + $0xd0] sm:$0xff] %v1830
      %1885 = vst [vmem:[%s280 + $0xd8] sm:$0xff] %v1835
      %1886 = vst [vmem:[%s280 + $0xe0] sm:$0xff] %v1840
      %1887 = vst [vmem:[%s280 + $0xe8] sm:$0xff] %v1845
      %1888 = vst [vmem:[%s280 + $0xf0] sm:$0xff] %v1850
      %1889 = vst [vmem:[%s280 + $0xf8] sm:$0xff] %v1855
      %s1890 = smul.u32 32, %s18
      %p1891 = scmp.lt.s32.totalorder %s1890, 63
      %s1892 = scalar_select %p1891, %s1890, 63
      %s1893 = smul.addr %s1892, 8
      %s1894 = scalar_lea.vmem %s7, %s1893
      // Predicated region
      $region49: #{mlp_forward.1} parent=47 // pred_check
        %p1895 = pneg %p188
      $region50: #{mlp_forward.1} parent=47 // pred_check_branch
        %1897 = sbr.rel (%p1895) target = $region52
      $region51: #{mlp_forward.1} parent=47 // pred_region
        %s1898 = smul.u32 32, %s18
      $region52: #{mlp_forward.1} parent=47 // pred_fallthru
        _
    $region48: #{mlp_forward.1} parent=5 // pred_fallthru
      _
    %p1899 = scmp.le.s32.totalorder 2, %s13
    // Predicated region
    $region53: #{mlp_forward.1} parent=5 // pred_check
      %p1900 = pneg %p1899
    $region54: #{mlp_forward.1} parent=5 // pred_check_branch
      %1902 = sbr.rel (%p1900) target = $region56
    $region55: #{mlp_forward.1} parent=5 // pred_region
      %s1903 = ssub.s32 %s13, 2
      // Predicated region
      $region57: #{mlp_forward.1} parent=55 // pred_check
        %p1904 = pneg %p194
      $region58: #{mlp_forward.1} parent=55 // pred_check_branch
        %1906 = sbr.rel (%p1904) target = $region60
      $region59: #{mlp_forward.1} parent=55 // pred_region
        %s1907 = smul.u32 32, %s19
        %p1908 = scmp.lt.s32.totalorder %s1907, 63
        %s1909 = scalar_select %p1908, %s1907, 63
        %s1910 = smul.addr %s1909, 8
        %s1911 = scalar_lea.vmem %s7, %s1910
      $region60: #{mlp_forward.1} parent=55 // pred_fallthru
        _
    $region56: #{mlp_forward.1} parent=5 // pred_fallthru
      _
  $region6: #{mlp_forward.1} parent=0 // loop_footer
    %s17 = sadd.s32 1, %s13
  $region7: #{mlp_forward.1} parent=0 // loop_footer_branch
    %12 = sbr.rel target = $region3
  $region8: #{mlp_forward.1} parent=0 // loop_exit
    _

</llo_original>
